<compile_context>
chip_gen: v7x
topology: tpu7x:2x2x1
jax: 0.10.0
libtpu: 0.0.40
codegen_flags: <defaults>
</compile_context>

<pallas_src>
import functools

import jax
import jax.numpy as jnp
from jax.experimental import pallas as pl
from jax.experimental.pallas import tpu as pltpu


_DATA_VMEM_BUDGET = 32 * 1024 * 1024   # budget for double-buffered row tiles
_VMEM_LIMIT = 48 * 1024 * 1024         # safe on v5e/v6e (128 MiB) and v7x (64 MiB)


def _round_up(x, m):
    return ((x + m - 1) // m) * m


def _derive_tile_rows(requested, n_rows, bytes_per_row):
    """Largest 128-multiple row tile that fits the VMEM data budget."""
    cap = max(128, (_DATA_VMEM_BUDGET // max(bytes_per_row, 1)) // 128 * 128)
    tr = min(_round_up(max(requested, 128), 128), _round_up(max(n_rows, 1), 128), cap)
    return max(tr, 128)


# --------------------------------------------------------------------------
# Kernel 1: node projection + (pool ++ gather) accumulate + fused MLP head
# --------------------------------------------------------------------------
def node_pool_head_kernel(x_ref, wp_ref, bp_ref, sel_ref, invc_ref, rep_ref,
                          w1a_ref, w1b_ref, b1_ref, w2_ref, b2_ref,
                          w3_ref, b3_ref,
                          xproj_ref, res_ref, acc_ref, *, n_rows, b_pad):
    f32, bf16 = jnp.float32, jnp.bfloat16
    i = pl.program_id(0)
    tr = x_ref.shape[0]

    @pl.when(i == 0)
    def _init():
        acc_ref[...] = jnp.zeros_like(acc_ref)

    # Zero the out-of-range tail rows of this tile so stale VMEM garbage
    # (possibly Inf/NaN) can never leak through the zero select columns.
    row = i * tr + jax.lax.broadcasted_iota(jnp.int32, (tr, 1), 0)
    xt = jnp.where(row < n_rows, x_ref[...], 0.0).astype(bf16)

    # in_proj on this row tile (bf16 MXU matmul, f32 accumulation + f32 bias)
    proj = jnp.dot(xt, wp_ref[...], preferred_element_type=f32) + bp_ref[...]
    xproj_ref[...] = proj                                   # f32 store (no re-cast)

    # One bf16 matmul accumulates pooled class sums (rows [:B]) AND the
    # gathered true-node rows (rows [B_pad:]) into the resident accumulator.
    acc_ref[...] += jnp.dot(sel_ref[...], proj.astype(bf16),
                            preferred_element_type=f32)

    @pl.when(i == pl.num_programs(0) - 1)
    def _head():
        # f32 mean normalization only at finalize (exact 0/1 bf16 mask above).
        class_emb = acc_ref[:b_pad, :] * invc_ref[...]       # [B_pad, D] f32
        x_true = acc_ref[b_pad:, :]                          # [BC_pad, D] f32

        # Reassociated head: class_emb @ W1a at batch size B first, then the
        # tiny repeat_interleave one-hot expands it to [BC, .].
        h1a = jnp.dot(class_emb.astype(bf16), w1a_ref[...],
                      preferred_element_type=f32)            # [B_pad, H]
        h1 = (jnp.dot(rep_ref[...], h1a.astype(bf16), preferred_element_type=f32)
              + jnp.dot(x_true.astype(bf16), w1b_ref[...], preferred_element_type=f32)
              + b1_ref[...])
        h1 = jnp.maximum(h1, 0.0)
        h2 = jnp.dot(h1.astype(bf16), w2_ref[...], preferred_element_type=f32) + b2_ref[...]
        h2 = jnp.maximum(h2, 0.0)
        # task_dim=1 result emitted into a lane-dense [BC_pad, 128] slab.
        res_ref[...] = jnp.dot(h2.astype(bf16), w3_ref[...],
                               preferred_element_type=f32) + b3_ref[...]


# --------------------------------------------------------------------------
# Kernel 2: edge projection (plain row-streamed matmul)
# --------------------------------------------------------------------------
def edge_proj_kernel(e_ref, wp_ref, bp_ref, o_ref):
    f32, bf16 = jnp.float32, jnp.bfloat16
    o_ref[...] = (jnp.dot(e_ref[...].astype(bf16), wp_ref[...],
                          preferred_element_type=f32) + bp_ref[...])


# --------------------------------------------------------------------------
# Wrapper
# --------------------------------------------------------------------------
@functools.partial(jax.jit,
                   static_argnames=("num_graphs", "num_classes", "tile_rows"))
def adapool_forward(x, edge_attr, target_mask, batch, true_idx, params,
                    *, num_graphs, num_classes, tile_rows=2048):
    f32, bf16 = jnp.float32, jnp.bfloat16
    N, indim = x.shape
    E = edge_attr.shape[0]
    D = params["wp"].shape[1]
    H = params["w1a"].shape[1]
    B = num_graphs
    BC = B * num_classes
    B_pad = _round_up(B, 8)
    BC_pad = _round_up(BC, 8)
    SB = B_pad + BC_pad                      # pooled rows ++ gathered rows

    # ---- row tiles derived from a per-generation-safe VMEM budget ----
    node_bpr = 2 * (indim * 4 + D * 4 + SB * 2)     # x(f32)+xproj(f32)+sel(bf16), dbl-buf
    edge_bpr = 2 * (indim * 4 + D * 4)
    tr = _derive_tile_rows(tile_rows, N, node_bpr)
    tre = _derive_tile_rows(tile_rows, E, edge_bpr)
    nx_tiles = pl.cdiv(N, tr)
    ne_tiles = pl.cdiv(E, tre)
    NT = nx_tiles * tr                       # tile-padded select-column count

    # ---- small wrapper-side operands (weights cast to bf16 once) ----
    wp = params["wp"].astype(bf16)                                  # [indim, D]
    bp = params["bp"].reshape(1, D).astype(f32)

    gids = jnp.arange(B, dtype=batch.dtype)
    tmask = target_mask.astype(f32).reshape(-1)                     # [N]
    onehot = (batch[None, :] == gids[:, None]).astype(f32) * tmask[None, :]   # [B, N] 0/1
    counts = jnp.maximum(onehot.sum(axis=1, keepdims=True), 1.0)    # /0 guard (see note)
    gather = (jnp.arange(N, dtype=jnp.int32)[None, :]
              == true_idx.astype(jnp.int32)[:, None]).astype(f32)   # [BC, N] 0/1

    # bf16 0/1 select matrix: rows [:B] = target-mask pooling, rows [B_pad:]
    # = true-node gather one-hot; zero for padding rows/columns.
    sel = jnp.zeros((SB, NT), bf16)
    sel = sel.at[:B, :N].set(onehot.astype(bf16))
    sel = sel.at[B_pad:B_pad + BC, :N].set(gather.astype(bf16))
    inv_counts = jnp.zeros((B_pad, 1), f32).at[:B].set(1.0 / counts)

    # repeat_interleave(num_classes) as a tiny one-hot (applied AFTER W1a)
    rep = (jnp.arange(BC)[:, None] // num_classes
           == jnp.arange(B)[None, :]).astype(bf16)
    rep = jnp.zeros((BC_pad, B_pad), bf16).at[:BC, :B].set(rep)

    w1a = params["w1a"].astype(bf16)                                # [D, H]
    w1b = params["w1b"].astype(bf16)                                # [D, H]
    b1 = params["b1"].reshape(1, H).astype(f32)
    w2 = params["w2"].astype(bf16)                                  # [H, D]
    b2 = params["b2"].reshape(1, D).astype(f32)
    w3 = jnp.zeros((D, 128), bf16).at[:, :1].set(params["w3"].astype(bf16))
    b3 = jnp.zeros((1, 128), f32).at[:, :1].set(params["b3"].astype(f32))

    inv_spec = pl.BlockSpec((B_pad, 1), lambda i: (0, 0))

    # ---- kernel 1: node projection + pool/gather accumulate + fused head ----
    k1_flops = 2 * N * indim * D + 2 * N * SB * D + 2 * BC_pad * (D * H + H * D + D * 128)
    k1_bytes = N * indim * 4 + SB * NT * 2 + N * D * 4 + (wp.size + w1a.size + w1b.size + w2.size) * 2
    kern1 = functools.partial(node_pool_head_kernel, n_rows=N, b_pad=B_pad)
    xproj, res_slab = pl.pallas_call(
        kern1,
        grid=(nx_tiles,),
        in_specs=[
            pl.BlockSpec((tr, indim), lambda i: (i, 0)),        # x row tile (f32, unpadded)
            pl.BlockSpec((indim, D), lambda i: (0, 0)),         # Wp
            pl.BlockSpec((1, D), lambda i: (0, 0)),             # bp
            pl.BlockSpec((SB, tr), lambda i: (0, i)),           # select tile (bf16 0/1)
            inv_spec,                                           # 1/n_count (f32)
            pl.BlockSpec((BC_pad, B_pad), lambda i: (0, 0)),    # repeat_interleave one-hot
            pl.BlockSpec((D, H), lambda i: (0, 0)),             # W1a
            pl.BlockSpec((D, H), lambda i: (0, 0)),             # W1b
            pl.BlockSpec((1, H), lambda i: (0, 0)),             # b1
            pl.BlockSpec((H, D), lambda i: (0, 0)),             # W2
            pl.BlockSpec((1, D), lambda i: (0, 0)),             # b2
            pl.BlockSpec((D, 128), lambda i: (0, 0)),           # W3 (lane-dense slab)
            pl.BlockSpec((1, 128), lambda i: (0, 0)),           # b3
        ],
        out_specs=(
            pl.BlockSpec((tr, D), lambda i: (i, 0)),            # projected nodes (f32)
            pl.BlockSpec((BC_pad, 128), lambda i: (0, 0)),      # head result slab
        ),
        out_shape=(
            jax.ShapeDtypeStruct((N, D), f32),
            jax.ShapeDtypeStruct((BC_pad, 128), f32),
        ),
        scratch_shapes=[pltpu.VMEM((SB, D), f32)],              # resident pool+gather acc
        compiler_params=pltpu.CompilerParams(
            dimension_semantics=("arbitrary",),                 # row axis carries the acc
            vmem_limit_bytes=_VMEM_LIMIT),
        cost_estimate=pl.CostEstimate(
            flops=int(k1_flops), transcendentals=0, bytes_accessed=int(k1_bytes)),
    )(x, wp, bp, sel, inv_counts, rep, w1a, w1b, b1, w2, b2, w3, b3)

    # ---- kernel 2: edge projection ----
    k2_flops = 2 * E * indim * D
    k2_bytes = E * indim * 4 + E * D * 4 + wp.size * 2
    eproj = pl.pallas_call(
        edge_proj_kernel,
        grid=(ne_tiles,),
        in_specs=[
            pl.BlockSpec((tre, indim), lambda i: (i, 0)),
            pl.BlockSpec((indim, D), lambda i: (0, 0)),
            pl.BlockSpec((1, D), lambda i: (0, 0)),
        ],
        out_specs=pl.BlockSpec((tre, D), lambda i: (i, 0)),
        out_shape=jax.ShapeDtypeStruct((E, D), f32),
        compiler_params=pltpu.CompilerParams(
            dimension_semantics=("parallel",),                  # rows independent
            vmem_limit_bytes=_VMEM_LIMIT),
        cost_estimate=pl.CostEstimate(
            flops=int(k2_flops), transcendentals=0, bytes_accessed=int(k2_bytes)),
    )(edge_attr, wp, bp)

    res = res_slab[:BC, :1]
    return res, xproj, eproj


# --------------------------------------------------------------------------
# Pure-JAX f32 reference mirroring the PyTorch forward semantics
# --------------------------------------------------------------------------
def reference_forward(x, edge_attr, target_mask, batch, true_idx, num_classes, params):
    xp = x @ params["wp"] + params["bp"]
    emb = xp  # identity backbone (see TODO(synk) above)
    B = int(batch.max()) + 1
    fm = target_mask.astype(jnp.float32).reshape(-1)
    target_emb = fm[:, None] * emb
    n_count = jax.ops.segment_sum(fm, batch, num_segments=B)
    class_emb = jax.ops.segment_sum(target_emb, batch, num_segments=B) / n_count[:, None]
    rep_class_emb = jnp.repeat(class_emb, num_classes, axis=0)
    x_true = xp[true_idx]
    cat = jnp.concatenate([rep_class_emb, x_true], axis=-1)
    w1 = jnp.concatenate([params["w1a"], params["w1b"]], axis=0)
    h1 = jnp.maximum(cat @ w1 + params["b1"], 0.0)
    h2 = jnp.maximum(h1 @ params["w2"] + params["b2"], 0.0)
    return h2 @ params["w3"] + params["b3"]


if __name__ == "__main__":
    # Small synthetic graph batch: B=2 graphs x 96 nodes, 144 edges, C=4 classes.
    indim, outdim = 16, 32
    B, nodes_per_graph, C = 2, 96, 4
    N = B * nodes_per_graph
    E = 144
    BC = B * C

    key = jax.random.PRNGKey(0)
    keys = jax.random.split(key, 12)

    def init(k, shape, fan_in):
        return (jax.random.normal(k, shape, jnp.float32) / jnp.sqrt(fan_in)).astype(jnp.float32)

    D, H = outdim, 2 * outdim
    params = {
        "wp": init(keys[0], (indim, D), indim),
        "bp": init(keys[1], (1, D), indim),
        "w1a": init(keys[2], (D, H), H),     # W1 rows acting on rep_class_emb
        "w1b": init(keys[3], (D, H), H),     # W1 rows acting on the true-node feats
        "b1": init(keys[4], (1, H), H),
        "w2": init(keys[5], (H, D), H),
        "b2": init(keys[6], (1, D), H),
        "w3": init(keys[7], (D, 1), D),      # Linear(D, 1) weight as a column
        "b3": init(keys[8], (1, 1), D),
    }

    x = jax.random.normal(keys[9], (N, indim), jnp.float32)
    edge_attr = jax.random.normal(keys[10], (E, indim), jnp.float32)
    batch = jnp.repeat(jnp.arange(B, dtype=jnp.int32), nodes_per_graph)     # [N]

    # target_node_mask: first half of each graph; true_nodes: C nodes per graph.
    local = jnp.tile(jnp.arange(nodes_per_graph), B)
    target_mask = (local < nodes_per_graph // 2).astype(jnp.float32)        # [N]
    true_sel = (local >= nodes_per_graph // 2) & (local < nodes_per_graph // 2 + C)
    true_idx = jnp.nonzero(true_sel, size=BC)[0].astype(jnp.int32)          # [BC]

    res, xproj, eproj = adapool_forward(
        x, edge_attr, target_mask, batch, true_idx, params,
        num_graphs=B, num_classes=C)
    jax.block_until_ready((res, xproj, eproj))

    ref = reference_forward(x, edge_attr, target_mask, batch, true_idx, C, params)
    assert res.shape == (BC, 1) and xproj.shape == (N, D) and eproj.shape == (E, D)
    # bf16 MXU inputs with f32 accumulation -> relaxed tolerance vs f32 reference
    assert jnp.allclose(res, ref, atol=5e-2, rtol=5e-2), "res mismatch vs reference"
    assert jnp.allclose(xproj, x @ params["wp"] + params["bp"],
                        atol=5e-2, rtol=5e-2), "node projection mismatch vs reference"
    assert jnp.allclose(eproj, edge_attr @ params["wp"] + params["bp"],
                        atol=5e-2, rtol=5e-2), "edge projection mismatch vs reference"

    print("KERNEL_OK")
</pallas_src>

<mosaic_0001>
module attributes {stable_mosaic.version = 11 : i64} {
  func.func @edge_proj_kernel(%arg0: i32, %arg1: memref<256x16xf32, #tpu.memory_space<vmem>>, %arg2: memref<16x32xbf16, #tpu.memory_space<vmem>>, %arg3: memref<1x32xf32, #tpu.memory_space<vmem>>, %arg4: memref<256x32xf32, #tpu.memory_space<vmem>>) attributes {dimension_semantics = [#tpu.dimension_semantics<parallel>], iteration_bounds = array<i64: 1>, scalar_prefetch = 0 : i64, scratch_operands = 0 : i64, tpu.core_type = #tpu.core_type<tc>, window_params = [{transform_indices = @transform_0, window_bounds = array<i64: 256, 16>}, {pipeline_mode = #tpu.pipeline_mode<synchronous>, transform_indices = @transform_1, window_bounds = array<i64: 16, 32>}, {pipeline_mode = #tpu.pipeline_mode<synchronous>, transform_indices = @transform_2, window_bounds = array<i64: 1, 32>}, {transform_indices = @transform_3, window_bounds = array<i64: 256, 32>}]} {
    %c0 = arith.constant 0 : index
    %c0_0 = arith.constant 0 : index
    %0 = vector.load %arg1[%c0, %c0_0] : memref<256x16xf32, #tpu.memory_space<vmem>>, vector<256x16xf32>
    %1 = arith.truncf %0 : vector<256x16xf32> to vector<256x16xbf16>
    %c0_1 = arith.constant 0 : index
    %c0_2 = arith.constant 0 : index
    %2 = vector.load %arg2[%c0_1, %c0_2] : memref<16x32xbf16, #tpu.memory_space<vmem>>, vector<16x32xbf16>
    %cst = arith.constant dense<0.000000e+00> : vector<256x32xf32>
    %3 = tpu.matmul %1, %2, %cst {dimension_numbers = #tpu.dot_dimension_numbers<[1], [0], [0], [1], [0, 0, 1, 1], [], []>} : vector<256x16xbf16>, vector<16x32xbf16>, vector<256x32xf32> -> vector<256x32xf32>
    %c0_3 = arith.constant 0 : index
    %c0_4 = arith.constant 0 : index
    %4 = vector.load %arg3[%c0_3, %c0_4] : memref<1x32xf32, #tpu.memory_space<vmem>>, vector<1x32xf32>
    %5 = vector.broadcast %4 : vector<1x32xf32> to vector<256x32xf32>
    %6 = arith.addf %3, %5 : vector<256x32xf32>
    %c0_5 = arith.constant 0 : index
    %c0_6 = arith.constant 0 : index
    %7 = vector.load %arg4[%c0_5, %c0_6] : memref<256x32xf32, #tpu.memory_space<vmem>>, vector<256x32xf32>
    tpu.vector_store %arg4[%c0_5, %c0_6], %6 {strides = array<i32>} : memref<256x32xf32, #tpu.memory_space<vmem>>, vector<256x32xf32>,
    return
  }
  func.func @transform_0(%arg0: i32) -> (i32, i32) {
    %c0_i32 = arith.constant 0 : i32
    %c0_i32_0 = arith.constant 0 : i32
    return %arg0, %c0_i32 : i32, i32
  }
  func.func @transform_1(%arg0: i32) -> (i32, i32) {
    %c0_i32 = arith.constant 0 : i32
    %c0_i32_0 = arith.constant 0 : i32
    %c0_i32_1 = arith.constant 0 : i32
    return %c0_i32, %c0_i32_0 : i32, i32
  }
  func.func @transform_2(%arg0: i32) -> (i32, i32) {
    %c0_i32 = arith.constant 0 : i32
    %c0_i32_0 = arith.constant 0 : i32
    %c0_i32_1 = arith.constant 0 : i32
    return %c0_i32, %c0_i32_0 : i32, i32
  }
  func.func @transform_3(%arg0: i32) -> (i32, i32) {
    %c0_i32 = arith.constant 0 : i32
    %c0_i32_0 = arith.constant 0 : i32
    return %arg0, %c0_i32 : i32, i32
  }
}

module attributes {stable_mosaic.version = 11 : i64} {
  func.func @node_pool_head_kernel(%arg0: i32, %arg1: memref<256x16xf32, #tpu.memory_space<vmem>>, %arg2: memref<16x32xbf16, #tpu.memory_space<vmem>>, %arg3: memref<1x32xf32, #tpu.memory_space<vmem>>, %arg4: memref<16x256xbf16, #tpu.memory_space<vmem>>, %arg5: memref<8x1xf32, #tpu.memory_space<vmem>>, %arg6: memref<8x8xbf16, #tpu.memory_space<vmem>>, %arg7: memref<32x64xbf16, #tpu.memory_space<vmem>>, %arg8: memref<32x64xbf16, #tpu.memory_space<vmem>>, %arg9: memref<1x64xf32, #tpu.memory_space<vmem>>, %arg10: memref<64x32xbf16, #tpu.memory_space<vmem>>, %arg11: memref<1x32xf32, #tpu.memory_space<vmem>>, %arg12: memref<32x128xbf16, #tpu.memory_space<vmem>>, %arg13: memref<1x128xf32, #tpu.memory_space<vmem>>, %arg14: memref<256x32xf32, #tpu.memory_space<vmem>>, %arg15: memref<8x128xf32, #tpu.memory_space<vmem>>, %arg16: memref<16x32xf32, #tpu.memory_space<vmem>>) attributes {dimension_semantics = [#tpu.dimension_semantics<arbitrary>], iteration_bounds = array<i64: 1>, scalar_prefetch = 0 : i64, scratch_operands = 1 : i64, tpu.core_type = #tpu.core_type<tc>, window_params = [{transform_indices = @transform_0, window_bounds = array<i64: 256, 16>}, {pipeline_mode = #tpu.pipeline_mode<synchronous>, transform_indices = @transform_1, window_bounds = array<i64: 16, 32>}, {pipeline_mode = #tpu.pipeline_mode<synchronous>, transform_indices = @transform_2, window_bounds = array<i64: 1, 32>}, {transform_indices = @transform_3, window_bounds = array<i64: 16, 256>}, {pipeline_mode = #tpu.pipeline_mode<synchronous>, transform_indices = @transform_4, window_bounds = array<i64: 8, 1>}, {pipeline_mode = #tpu.pipeline_mode<synchronous>, transform_indices = @transform_5, window_bounds = array<i64: 8, 8>}, {pipeline_mode = #tpu.pipeline_mode<synchronous>, transform_indices = @transform_6, window_bounds = array<i64: 32, 64>}, {pipeline_mode = #tpu.pipeline_mode<synchronous>, transform_indices = @transform_7, window_bounds = array<i64: 32, 64>}, {pipeline_mode = #tpu.pipeline_mode<synchronous>, transform_indices = @transform_8, window_bounds = array<i64: 1, 64>}, {pipeline_mode = #tpu.pipeline_mode<synchronous>, transform_indices = @transform_9, window_bounds = array<i64: 64, 32>}, {pipeline_mode = #tpu.pipeline_mode<synchronous>, transform_indices = @transform_10, window_bounds = array<i64: 1, 32>}, {pipeline_mode = #tpu.pipeline_mode<synchronous>, transform_indices = @transform_11, window_bounds = array<i64: 32, 128>}, {pipeline_mode = #tpu.pipeline_mode<synchronous>, transform_indices = @transform_12, window_bounds = array<i64: 1, 128>}, {transform_indices = @transform_13, window_bounds = array<i64: 256, 32>}, {pipeline_mode = #tpu.pipeline_mode<synchronous>, transform_indices = @transform_14, window_bounds = array<i64: 8, 128>}]} {
    %c0_i32 = arith.constant 0 : i32
    %0 = arith.cmpi eq, %arg0, %c0_i32 : i32
    %1 = arith.extui %0 : i1 to i32
    %c0_i32_0 = arith.constant 0 : i32
    %2 = arith.cmpi ne, %1, %c0_i32_0 : i32
    scf.if %2 {
      %cst_18 = arith.constant 0.000000e+00 : f32
      %30 = vector.broadcast %cst_18 : f32 to vector<16x32xf32>
      %c0_19 = arith.constant 0 : index
      %c0_20 = arith.constant 0 : index
      %31 = vector.load %arg16[%c0_19, %c0_20] : memref<16x32xf32, #tpu.memory_space<vmem>>, vector<16x32xf32>
      tpu.vector_store %arg16[%c0_19, %c0_20], %30 {strides = array<i32>} : memref<16x32xf32, #tpu.memory_space<vmem>>, vector<16x32xf32>,
    } else {
    }
    %c256_i32 = arith.constant 256 : i32
    %3 = arith.muli %arg0, %c256_i32 : i32
    %4 = tpu.iota {dimensions = array<i32: 0>} : vector<256x1xi32>
    %5 = vector.broadcast %3 : i32 to vector<256x1xi32>
    %6 = arith.addi %5, %4 : vector<256x1xi32>
    %c192_i32 = arith.constant 192 : i32
    %7 = vector.broadcast %c192_i32 : i32 to vector<256x1xi32>
    %8 = arith.cmpi slt, %6, %7 : vector<256x1xi32>
    %c0 = arith.constant 0 : index
    %c0_1 = arith.constant 0 : index
    %9 = vector.load %arg1[%c0, %c0_1] : memref<256x16xf32, #tpu.memory_space<vmem>>, vector<256x16xf32>
    %cst = arith.constant 0.000000e+00 : f32
    %10 = vector.shape_cast %8 : vector<256x1xi1> to vector<256x1xi1>
    %11 = vector.broadcast %10 : vector<256x1xi1> to vector<256x16xi1>
    %12 = vector.broadcast %cst : f32 to vector<256x16xf32>
    %13 = arith.select %11, %9, %12 : vector<256x16xi1>, vector<256x16xf32>
    %14 = arith.truncf %13 : vector<256x16xf32> to vector<256x16xbf16>
    %c0_2 = arith.constant 0 : index
    %c0_3 = arith.constant 0 : index
    %15 = vector.load %arg2[%c0_2, %c0_3] : memref<16x32xbf16, #tpu.memory_space<vmem>>, vector<16x32xbf16>
    %cst_4 = arith.constant dense<0.000000e+00> : vector<256x32xf32>
    %16 = tpu.matmul %14, %15, %cst_4 {dimension_numbers = #tpu.dot_dimension_numbers<[1], [0], [0], [1], [0, 0, 1, 1], [], []>} : vector<256x16xbf16>, vector<16x32xbf16>, vector<256x32xf32> -> vector<256x32xf32>
    %c0_5 = arith.constant 0 : index
    %c0_6 = arith.constant 0 : index
    %17 = vector.load %arg3[%c0_5, %c0_6] : memref<1x32xf32, #tpu.memory_space<vmem>>, vector<1x32xf32>
    %18 = vector.broadcast %17 : vector<1x32xf32> to vector<256x32xf32>
    %19 = arith.addf %16, %18 : vector<256x32xf32>
    %c0_7 = arith.constant 0 : index
    %c0_8 = arith.constant 0 : index
    %20 = vector.load %arg14[%c0_7, %c0_8] : memref<256x32xf32, #tpu.memory_space<vmem>>, vector<256x32xf32>
    tpu.vector_store %arg14[%c0_7, %c0_8], %19 {strides = array<i32>} : memref<256x32xf32, #tpu.memory_space<vmem>>, vector<256x32xf32>,
    %c0_9 = arith.constant 0 : index
    %c0_10 = arith.constant 0 : index
    %21 = vector.load %arg16[%c0_9, %c0_10] : memref<16x32xf32, #tpu.memory_space<vmem>>, vector<16x32xf32>
    %c0_11 = arith.constant 0 : index
    %c0_12 = arith.constant 0 : index
    %22 = vector.load %arg4[%c0_11, %c0_12] : memref<16x256xbf16, #tpu.memory_space<vmem>>, vector<16x256xbf16>
    %23 = arith.truncf %19 : vector<256x32xf32> to vector<256x32xbf16>
    %cst_13 = arith.constant dense<0.000000e+00> : vector<16x32xf32>
    %24 = tpu.matmul %22, %23, %cst_13 {dimension_numbers = #tpu.dot_dimension_numbers<[1], [0], [0], [1], [0, 0, 1, 1], [], []>} : vector<16x256xbf16>, vector<256x32xbf16>, vector<16x32xf32> -> vector<16x32xf32>
    %25 = arith.addf %21, %24 : vector<16x32xf32>
    %c0_14 = arith.constant 0 : index
    %c0_15 = arith.constant 0 : index
    %26 = vector.load %arg16[%c0_14, %c0_15] : memref<16x32xf32, #tpu.memory_space<vmem>>, vector<16x32xf32>
    tpu.vector_store %arg16[%c0_14, %c0_15], %25 {strides = array<i32>} : memref<16x32xf32, #tpu.memory_space<vmem>>, vector<16x32xf32>,
    %c0_i32_16 = arith.constant 0 : i32
    %27 = arith.cmpi eq, %arg0, %c0_i32_16 : i32
    %28 = arith.extui %27 : i1 to i32
    %c0_i32_17 = arith.constant 0 : i32
    %29 = arith.cmpi ne, %28, %c0_i32_17 : i32
    scf.if %29 {
      %c0_18 = arith.constant 0 : index
      %c0_19 = arith.constant 0 : index
      %30 = vector.load %arg16[%c0_18, %c0_19] : memref<16x32xf32, #tpu.memory_space<vmem>>, vector<8x32xf32>
      %c0_20 = arith.constant 0 : index
      %c0_21 = arith.constant 0 : index
      %31 = vector.load %arg5[%c0_20, %c0_21] : memref<8x1xf32, #tpu.memory_space<vmem>>, vector<8x1xf32>
      %32 = vector.broadcast %31 : vector<8x1xf32> to vector<8x32xf32>
      %33 = arith.mulf %30, %32 : vector<8x32xf32>
      %c8 = arith.constant 8 : index
      %c0_22 = arith.constant 0 : index
      %34 = vector.load %arg16[%c8, %c0_22] : memref<16x32xf32, #tpu.memory_space<vmem>>, vector<8x32xf32>
      %35 = arith.truncf %33 : vector<8x32xf32> to vector<8x32xbf16>
      %c0_23 = arith.constant 0 : index
      %c0_24 = arith.constant 0 : index
      %36 = vector.load %arg7[%c0_23, %c0_24] : memref<32x64xbf16, #tpu.memory_space<vmem>>, vector<32x64xbf16>
      %cst_25 = arith.constant dense<0.000000e+00> : vector<8x64xf32>
      %37 = tpu.matmul %35, %36, %cst_25 {dimension_numbers = #tpu.dot_dimension_numbers<[1], [0], [0], [1], [0, 0, 1, 1], [], []>} : vector<8x32xbf16>, vector<32x64xbf16>, vector<8x64xf32> -> vector<8x64xf32>
      %c0_26 = arith.constant 0 : index
      %c0_27 = arith.constant 0 : index
      %38 = vector.load %arg6[%c0_26, %c0_27] : memref<8x8xbf16, #tpu.memory_space<vmem>>, vector<8x8xbf16>
      %39 = arith.truncf %37 : vector<8x64xf32> to vector<8x64xbf16>
      %cst_28 = arith.constant dense<0.000000e+00> : vector<8x64xf32>
      %40 = tpu.matmul %38, %39, %cst_28 {dimension_numbers = #tpu.dot_dimension_numbers<[1], [0], [0], [1], [0, 0, 1, 1], [], []>} : vector<8x8xbf16>, vector<8x64xbf16>, vector<8x64xf32> -> vector<8x64xf32>
      %41 = arith.truncf %34 : vector<8x32xf32> to vector<8x32xbf16>
      %c0_29 = arith.constant 0 : index
      %c0_30 = arith.constant 0 : index
      %42 = vector.load %arg8[%c0_29, %c0_30] : memref<32x64xbf16, #tpu.memory_space<vmem>>, vector<32x64xbf16>
      %cst_31 = arith.constant dense<0.000000e+00> : vector<8x64xf32>
      %43 = tpu.matmul %41, %42, %cst_31 {dimension_numbers = #tpu.dot_dimension_numbers<[1], [0], [0], [1], [0, 0, 1, 1], [], []>} : vector<8x32xbf16>, vector<32x64xbf16>, vector<8x64xf32> -> vector<8x64xf32>
      %44 = arith.addf %40, %43 : vector<8x64xf32>
      %c0_32 = arith.constant 0 : index
      %c0_33 = arith.constant 0 : index
      %45 = vector.load %arg9[%c0_32, %c0_33] : memref<1x64xf32, #tpu.memory_space<vmem>>, vector<1x64xf32>
      %46 = vector.broadcast %45 : vector<1x64xf32> to vector<8x64xf32>
      %47 = arith.addf %44, %46 : vector<8x64xf32>
      %cst_34 = arith.constant 0.000000e+00 : f32
      %48 = vector.broadcast %cst_34 : f32 to vector<8x64xf32>
      %49 = arith.maximumf %47, %48 : vector<8x64xf32>
      %50 = arith.truncf %49 : vector<8x64xf32> to vector<8x64xbf16>
      %c0_35 = arith.constant 0 : index
      %c0_36 = arith.constant 0 : index
      %51 = vector.load %arg10[%c0_35, %c0_36] : memref<64x32xbf16, #tpu.memory_space<vmem>>, vector<64x32xbf16>
      %cst_37 = arith.constant dense<0.000000e+00> : vector<8x32xf32>
      %52 = tpu.matmul %50, %51, %cst_37 {dimension_numbers = #tpu.dot_dimension_numbers<[1], [0], [0], [1], [0, 0, 1, 1], [], []>} : vector<8x64xbf16>, vector<64x32xbf16>, vector<8x32xf32> -> vector<8x32xf32>
      %c0_38 = arith.constant 0 : index
      %c0_39 = arith.constant 0 : index
      %53 = vector.load %arg11[%c0_38, %c0_39] : memref<1x32xf32, #tpu.memory_space<vmem>>, vector<1x32xf32>
      %54 = vector.broadcast %53 : vector<1x32xf32> to vector<8x32xf32>
      %55 = arith.addf %52, %54 : vector<8x32xf32>
      %cst_40 = arith.constant 0.000000e+00 : f32
      %56 = vector.broadcast %cst_40 : f32 to vector<8x32xf32>
      %57 = arith.maximumf %55, %56 : vector<8x32xf32>
      %58 = arith.truncf %57 : vector<8x32xf32> to vector<8x32xbf16>
      %c0_41 = arith.constant 0 : index
      %c0_42 = arith.constant 0 : index
      %59 = vector.load %arg12[%c0_41, %c0_42] : memref<32x128xbf16, #tpu.memory_space<vmem>>, vector<32x128xbf16>
      %cst_43 = arith.constant dense<0.000000e+00> : vector<8x128xf32>
      %60 = tpu.matmul %58, %59, %cst_43 {dimension_numbers = #tpu.dot_dimension_numbers<[1], [0], [0], [1], [0, 0, 1, 1], [], []>} : vector<8x32xbf16>, vector<32x128xbf16>, vector<8x128xf32> -> vector<8x128xf32>
      %c0_44 = arith.constant 0 : index
      %c0_45 = arith.constant 0 : index
      %61 = vector.load %arg13[%c0_44, %c0_45] : memref<1x128xf32, #tpu.memory_space<vmem>>, vector<1x128xf32>
      %62 = vector.broadcast %61 : vector<1x128xf32> to vector<8x128xf32>
      %63 = arith.addf %60, %62 : vector<8x128xf32>
      %c0_46 = arith.constant 0 : index
      %c0_47 = arith.constant 0 : index
      %64 = vector.load %arg15[%c0_46, %c0_47] : memref<8x128xf32, #tpu.memory_space<vmem>>, vector<8x128xf32>
      tpu.vector_store %arg15[%c0_46, %c0_47], %63 {strides = array<i32>} : memref<8x128xf32, #tpu.memory_space<vmem>>, vector<8x128xf32>,
    } else {
    }
    return
  }
  func.func @transform_0(%arg0: i32) -> (i32, i32) {
    %c0_i32 = arith.constant 0 : i32
    %c0_i32_0 = arith.constant 0 : i32
    return %arg0, %c0_i32 : i32, i32
  }
  func.func @transform_1(%arg0: i32) -> (i32, i32) {
    %c0_i32 = arith.constant 0 : i32
    %c0_i32_0 = arith.constant 0 : i32
    %c0_i32_1 = arith.constant 0 : i32
    return %c0_i32, %c0_i32_0 : i32, i32
  }
  func.func @transform_2(%arg0: i32) -> (i32, i32) {
    %c0_i32 = arith.constant 0 : i32
    %c0_i32_0 = arith.constant 0 : i32
    %c0_i32_1 = arith.constant 0 : i32
    return %c0_i32, %c0_i32_0 : i32, i32
  }
  func.func @transform_3(%arg0: i32) -> (i32, i32) {
    %c0_i32 = arith.constant 0 : i32
    %c0_i32_0 = arith.constant 0 : i32
    return %c0_i32, %arg0 : i32, i32
  }
  func.func @transform_4(%arg0: i32) -> (i32, i32) {
    %c0_i32 = arith.constant 0 : i32
    %c0_i32_0 = arith.constant 0 : i32
    %c0_i32_1 = arith.constant 0 : i32
    return %c0_i32, %c0_i32_0 : i32, i32
  }
  func.func @transform_5(%arg0: i32) -> (i32, i32) {
    %c0_i32 = arith.constant 0 : i32
    %c0_i32_0 = arith.constant 0 : i32
    %c0_i32_1 = arith.constant 0 : i32
    return %c0_i32, %c0_i32_0 : i32, i32
  }
  func.func @transform_6(%arg0: i32) -> (i32, i32) {
    %c0_i32 = arith.constant 0 : i32
    %c0_i32_0 = arith.constant 0 : i32
    %c0_i32_1 = arith.constant 0 : i32
    return %c0_i32, %c0_i32_0 : i32, i32
  }
  func.func @transform_7(%arg0: i32) -> (i32, i32) {
    %c0_i32 = arith.constant 0 : i32
    %c0_i32_0 = arith.constant 0 : i32
    %c0_i32_1 = arith.constant 0 : i32
    return %c0_i32, %c0_i32_0 : i32, i32
  }
  func.func @transform_8(%arg0: i32) -> (i32, i32) {
    %c0_i32 = arith.constant 0 : i32
    %c0_i32_0 = arith.constant 0 : i32
    %c0_i32_1 = arith.constant 0 : i32
    return %c0_i32, %c0_i32_0 : i32, i32
  }
  func.func @transform_9(%arg0: i32) -> (i32, i32) {
    %c0_i32 = arith.constant 0 : i32
    %c0_i32_0 = arith.constant 0 : i32
    %c0_i32_1 = arith.constant 0 : i32
    return %c0_i32, %c0_i32_0 : i32, i32
  }
  func.func @transform_10(%arg0: i32) -> (i32, i32) {
    %c0_i32 = arith.constant 0 : i32
    %c0_i32_0 = arith.constant 0 : i32
    %c0_i32_1 = arith.constant 0 : i32
    return %c0_i32, %c0_i32_0 : i32, i32
  }
  func.func @transform_11(%arg0: i32) -> (i32, i32) {
    %c0_i32 = arith.constant 0 : i32
    %c0_i32_0 = arith.constant 0 : i32
    %c0_i32_1 = arith.constant 0 : i32
    return %c0_i32, %c0_i32_0 : i32, i32
  }
  func.func @transform_12(%arg0: i32) -> (i32, i32) {
    %c0_i32 = arith.constant 0 : i32
    %c0_i32_0 = arith.constant 0 : i32
    %c0_i32_1 = arith.constant 0 : i32
    return %c0_i32, %c0_i32_0 : i32, i32
  }
  func.func @transform_13(%arg0: i32) -> (i32, i32) {
    %c0_i32 = arith.constant 0 : i32
    %c0_i32_0 = arith.constant 0 : i32
    return %arg0, %c0_i32 : i32, i32
  }
  func.func @transform_14(%arg0: i32) -> (i32, i32) {
    %c0_i32 = arith.constant 0 : i32
    %c0_i32_0 = arith.constant 0 : i32
    %c0_i32_1 = arith.constant 0 : i32
    return %c0_i32, %c0_i32_0 : i32, i32
  }
}

</mosaic_0001>

<llo_original>
// kernel: adapool_forward.3
$region0: #{adapool_forward.3}
  #allocation0 [shape = 'u32[]', space=smem, size = 0x4, offset = 0x4, fixed_abs, tag = 'smem constant byte address 0x4 - core index']
  #allocation1 [shape = 'u32[144,128]{1,0:T(1,128)}', space=vmem, size = 0x12000, scoped, tag = 'internal scratch']
  %s0 = inlined_call_operand.vmem [shape: f32[144,16], index: 0, kind: input, shape index: {}]
  %s1 = inlined_call_operand.vmem [shape: bf16[16,32], index: 1, kind: input, shape index: {}]
  %s2 = inlined_call_operand.vmem [shape: f32[1,32], index: 2, kind: input, shape index: {}]
  %s3 = inlined_call_operand.vmem [shape: f32[144,32], index: 3, kind: output, shape index: {}]
  %s4 = sld [smem:[#allocation0]]
  $region56: #{adapool_forward.3} parent=0
    _
  %s6 = ssub.s32 1, %s4
  %s7 = scalar_select 0, %s6, %s4
  $region1: #{adapool_forward.3} parent=0
    #allocation2 [shape = 'u8[131072]{0}', space=vmem, size = 0x20000, scoped, tag = 'output window, operand 0, single buffered']
    // Predicated region
    $region2: #{adapool_forward.3} parent=1 // pred_check
      _
    $region3: #{adapool_forward.3} parent=1 // pred_check_branch
      %9 = sbr.rel (0) target = $region5
    $region4: #{adapool_forward.3} parent=1 // pred_region
      _
    $region5: #{adapool_forward.3} parent=1 // pred_fallthru
      _
    // Predicated region
    $region6: #{adapool_forward.3} parent=1 // pred_check
      _
    $region7: #{adapool_forward.3} parent=1 // pred_check_branch
      %11 = sbr.rel (0) target = $region9
    $region8: #{adapool_forward.3} parent=1 // pred_region
      _
    $region9: #{adapool_forward.3} parent=1 // pred_fallthru
      _
    // Predicated region
    $region10: #{adapool_forward.3} parent=1 // pred_check
      _
    $region11: #{adapool_forward.3} parent=1 // pred_check_branch
      %13 = sbr.rel (0) target = $region13
    $region12: #{adapool_forward.3} parent=1 // pred_region
      _
    $region13: #{adapool_forward.3} parent=1 // pred_fallthru
      _
    %v15 = vld [vmem:[%s0] sm:$0xff]
    %v16 = vld [vmem:[%s0 + $0x8] sm:$0xff]
    %v17 = vld [vmem:[%s0 + $0x10] sm:$0xff]
    %v18 = vld [vmem:[%s0 + $0x18] sm:$0xff]
    %v19 = vld [vmem:[%s0 + $0x20] sm:$0xff]
    %v20 = vld [vmem:[%s0 + $0x28] sm:$0xff]
    %v21 = vld [vmem:[%s0 + $0x30] sm:$0xff]
    %v22 = vld [vmem:[%s0 + $0x38] sm:$0xff]
    %v23 = vld [vmem:[%s0 + $0x40] sm:$0xff]
    %v24 = vld [vmem:[%s0 + $0x48] sm:$0xff]
    %v25 = vld [vmem:[%s0 + $0x50] sm:$0xff]
    %v26 = vld [vmem:[%s0 + $0x58] sm:$0xff]
    %v27 = vld [vmem:[%s0 + $0x60] sm:$0xff]
    %v28 = vld [vmem:[%s0 + $0x68] sm:$0xff]
    %v29 = vld [vmem:[%s0 + $0x70] sm:$0xff]
    %v30 = vld [vmem:[%s0 + $0x78] sm:$0xff]
    %v31 = vld [vmem:[%s0 + $0x80] sm:$0xff]
    %v32 = vld [vmem:[%s0 + $0x88] sm:$0xff]
    %v33 = vld [vmem:[%s0 + $0x90] sm:$0xff]
    %v34 = vld [vmem:[%s0 + $0x98] sm:$0xff]
    %v35 = vld [vmem:[%s0 + $0xa0] sm:$0xff]
    %v36 = vld [vmem:[%s0 + $0xa8] sm:$0xff]
    %v37 = vld [vmem:[%s0 + $0xb0] sm:$0xff]
    %v38 = vld [vmem:[%s0 + $0xb8] sm:$0xff]
    %v39 = vld [vmem:[%s0 + $0xc0] sm:$0xff]
    %v40 = vld [vmem:[%s0 + $0xc8] sm:$0xff]
    %v41 = vld [vmem:[%s0 + $0xd0] sm:$0xff]
    %v42 = vld [vmem:[%s0 + $0xd8] sm:$0xff]
    %v43 = vld [vmem:[%s0 + $0xe0] sm:$0xff]
    %v44 = vld [vmem:[%s0 + $0xe8] sm:$0xff]
    %v45 = vld [vmem:[%s0 + $0xf0] sm:$0xff]
    %v46 = vld [vmem:[%s0 + $0xf8] sm:$0xff]
    %v47 = vpack.c.bf16 %v16, %v15
    %v48 = vpack.c.bf16 %v18, %v17
    %v49 = vpack.c.bf16 %v20, %v19
    %v50 = vpack.c.bf16 %v22, %v21
    %v51 = vpack.c.bf16 %v24, %v23
    %v52 = vpack.c.bf16 %v26, %v25
    %v53 = vpack.c.bf16 %v28, %v27
    %v54 = vpack.c.bf16 %v30, %v29
    %v55 = vpack.c.bf16 %v32, %v31
    %v56 = vpack.c.bf16 %v34, %v33
    %v57 = vpack.c.bf16 %v36, %v35
    %v58 = vpack.c.bf16 %v38, %v37
    %v59 = vpack.c.bf16 %v40, %v39
    %v60 = vpack.c.bf16 %v42, %v41
    %v61 = vpack.c.bf16 %v44, %v43
    %v62 = vpack.c.bf16 %v46, %v45
    %v63 = vld [vmem:[%s1] sm:$0xf]
    %v64 = vld [vmem:[%s1 + $0x4] sm:$0xf]
    %v65 = vld [vmem:[%s2] sm:$0x1]
    %v67 = vlaneseq
    %v68 = vshrl.u32 %v67, 7
    %v69 = vsub.s32 0, %v68
    %v70 = vrot.slane %v65, %v69
    %v74 = vunpack.c.l.b16 %v63
    %v75 = vunpack.c.l.b16 %v64
    %v76 = vpack.c.b16 %v75, %v74
    %vm78 = vcmask 130048
    %v80 = vsel %vm78, %v47, 0
    %v83 = vsel %vm78, %v48, 0
    %v86 = vsel %vm78, %v49, 0
    %v89 = vsel %vm78, %v50, 0
    %v92 = vsel %vm78, %v51, 0
    %v95 = vsel %vm78, %v52, 0
    %v98 = vsel %vm78, %v53, 0
    %v101 = vsel %vm78, %v54, 0
    %v104 = vsel %vm78, %v55, 0
    %v107 = vsel %vm78, %v56, 0
    %v110 = vsel %vm78, %v57, 0
    %v113 = vsel %vm78, %v58, 0
    %v116 = vsel %vm78, %v59, 0
    %v119 = vsel %vm78, %v60, 0
    %v122 = vsel %vm78, %v61, 0
    %v125 = vsel %vm78, %v62, 0
    %127 = vmatprep.subr.bf16.mxu0 0
    %128 = vmatpush1.bf16.msra.mxu0 %v76
    %129 = vmatprep.subr.bf16.mxu0 0
    %130 = vmatpush1.bf16.msra.mxu0 0
    %131 = vmatprep.subr.bf16.mxu0 0
    %132 = vmatpush1.bf16.msra.mxu0 0
    %133 = vmatprep.subr.bf16.mxu0 0
    %134 = vmatpush1.bf16.msra.mxu0 0
    %135 = vmatprep.subr.bf16.mxu0 0
    %136 = vmatpush1.bf16.msra.mxu0 0
    %137 = vmatprep.subr.bf16.mxu0 0
    %138 = vmatpush1.bf16.msra.mxu0 0
    %139 = vmatprep.subr.bf16.mxu0 0
    %140 = vmatpush1.bf16.msra.mxu0 0
    %141 = vmatprep.subr.bf16.mxu0 0
    %142 = vmatpush1.bf16.msra.mxu0 0
    %143 = vmatprep.subr.bf16.mxu0 0
    %144 = vmatpush1.bf16.msra.mxu0 0
    %145 = vmatprep.subr.bf16.mxu0 0
    %146 = vmatpush1.bf16.msra.mxu0 0
    %147 = vmatprep.subr.bf16.mxu0 0
    %148 = vmatpush1.bf16.msra.mxu0 0
    %149 = vmatprep.subr.bf16.mxu0 0
    %150 = vmatpush1.bf16.msra.mxu0 0
    %151 = vmatprep.subr.bf16.mxu0 0
    %152 = vmatpush1.bf16.msra.mxu0 0
    %153 = vmatprep.subr.bf16.mxu0 0
    %154 = vmatpush1.bf16.msra.mxu0 0
    %155 = vmatprep.subr.bf16.mxu0 0
    %156 = vmatpush1.bf16.msra.mxu0 0
    %157 = vmatprep.subr.bf16.mxu0 0
    %158 = vmatpush1.bf16.msra.mxu0 0
    %159 = vmatprep.mubr.bf16.mxu0 0
    %160 = vmatmul.mubr.bf16.gmra.mrb[0].mxu0 %v80
    %v161 = vpop.f32.mrb[0].mxu0
    %v162 = vadd.f32 %v70, %v161
    %v163 = vpop.f32.mrb[0].mxu0
    %v164 = vpop.f32.mrb[0].mxu0
    %v165 = vadd.f32 %v70, %v164
    %v166 = vpop.f32.mrb[0].mxu0
    %167 = vmatprep.mubr.bf16.mxu0 0
    %168 = vmatmul.mubr.bf16.gmra.mrb[0].mxu0 %v83
    %v169 = vpop.f32.mrb[0].mxu0
    %v170 = vadd.f32 %v70, %v169
    %v171 = vpop.f32.mrb[0].mxu0
    %v172 = vpop.f32.mrb[0].mxu0
    %v173 = vadd.f32 %v70, %v172
    %v174 = vpop.f32.mrb[0].mxu0
    %175 = vmatprep.mubr.bf16.mxu0 0
    %176 = vmatmul.mubr.bf16.gmra.mrb[0].mxu0 %v86
    %v177 = vpop.f32.mrb[0].mxu0
    %v178 = vadd.f32 %v70, %v177
    %v179 = vpop.f32.mrb[0].mxu0
    %v180 = vpop.f32.mrb[0].mxu0
    %v181 = vadd.f32 %v70, %v180
    %v182 = vpop.f32.mrb[0].mxu0
    %183 = vmatprep.mubr.bf16.mxu0 0
    %184 = vmatmul.mubr.bf16.gmra.mrb[0].mxu0 %v89
    %v185 = vpop.f32.mrb[0].mxu0
    %v186 = vadd.f32 %v70, %v185
    %v187 = vpop.f32.mrb[0].mxu0
    %v188 = vpop.f32.mrb[0].mxu0
    %v189 = vadd.f32 %v70, %v188
    %v190 = vpop.f32.mrb[0].mxu0
    %191 = vmatprep.mubr.bf16.mxu0 0
    %192 = vmatmul.mubr.bf16.gmra.mrb[0].mxu0 %v92
    %v193 = vpop.f32.mrb[0].mxu0
    %v194 = vadd.f32 %v70, %v193
    %v195 = vpop.f32.mrb[0].mxu0
    %v196 = vpop.f32.mrb[0].mxu0
    %v197 = vadd.f32 %v70, %v196
    %v198 = vpop.f32.mrb[0].mxu0
    %199 = vmatprep.mubr.bf16.mxu0 0
    %200 = vmatmul.mubr.bf16.gmra.mrb[0].mxu0 %v95
    %v201 = vpop.f32.mrb[0].mxu0
    %v202 = vadd.f32 %v70, %v201
    %v203 = vpop.f32.mrb[0].mxu0
    %v204 = vpop.f32.mrb[0].mxu0
    %v205 = vadd.f32 %v70, %v204
    %v206 = vpop.f32.mrb[0].mxu0
    %207 = vmatprep.mubr.bf16.mxu0 0
    %208 = vmatmul.mubr.bf16.gmra.mrb[0].mxu0 %v98
    %v209 = vpop.f32.mrb[0].mxu0
    %v210 = vadd.f32 %v70, %v209
    %v211 = vpop.f32.mrb[0].mxu0
    %v212 = vpop.f32.mrb[0].mxu0
    %v213 = vadd.f32 %v70, %v212
    %v214 = vpop.f32.mrb[0].mxu0
    %215 = vmatprep.mubr.bf16.mxu0 0
    %216 = vmatmul.mubr.bf16.gmra.mrb[0].mxu0 %v101
    %v217 = vpop.f32.mrb[0].mxu0
    %v218 = vadd.f32 %v70, %v217
    %v219 = vpop.f32.mrb[0].mxu0
    %v220 = vpop.f32.mrb[0].mxu0
    %v221 = vadd.f32 %v70, %v220
    %v222 = vpop.f32.mrb[0].mxu0
    %223 = vmatprep.mubr.bf16.mxu0 0
    %224 = vmatmul.mubr.bf16.gmra.mrb[0].mxu0 %v104
    %v225 = vpop.f32.mrb[0].mxu0
    %v226 = vadd.f32 %v70, %v225
    %v227 = vpop.f32.mrb[0].mxu0
    %v228 = vpop.f32.mrb[0].mxu0
    %v229 = vadd.f32 %v70, %v228
    %v230 = vpop.f32.mrb[0].mxu0
    %231 = vmatprep.mubr.bf16.mxu0 0
    %232 = vmatmul.mubr.bf16.gmra.mrb[0].mxu0 %v107
    %v233 = vpop.f32.mrb[0].mxu0
    %v234 = vadd.f32 %v70, %v233
    %v235 = vpop.f32.mrb[0].mxu0
    %v236 = vpop.f32.mrb[0].mxu0
    %v237 = vadd.f32 %v70, %v236
    %v238 = vpop.f32.mrb[0].mxu0
    %239 = vmatprep.mubr.bf16.mxu0 0
    %240 = vmatmul.mubr.bf16.gmra.mrb[0].mxu0 %v110
    %v241 = vpop.f32.mrb[0].mxu0
    %v242 = vadd.f32 %v70, %v241
    %v243 = vpop.f32.mrb[0].mxu0
    %v244 = vpop.f32.mrb[0].mxu0
    %v245 = vadd.f32 %v70, %v244
    %v246 = vpop.f32.mrb[0].mxu0
    %247 = vmatprep.mubr.bf16.mxu0 0
    %248 = vmatmul.mubr.bf16.gmra.mrb[0].mxu0 %v113
    %v249 = vpop.f32.mrb[0].mxu0
    %v250 = vadd.f32 %v70, %v249
    %v251 = vpop.f32.mrb[0].mxu0
    %v252 = vpop.f32.mrb[0].mxu0
    %v253 = vadd.f32 %v70, %v252
    %v254 = vpop.f32.mrb[0].mxu0
    %255 = vmatprep.mubr.bf16.mxu0 0
    %256 = vmatmul.mubr.bf16.gmra.mrb[0].mxu0 %v116
    %v257 = vpop.f32.mrb[0].mxu0
    %v258 = vadd.f32 %v70, %v257
    %v259 = vpop.f32.mrb[0].mxu0
    %v260 = vpop.f32.mrb[0].mxu0
    %v261 = vadd.f32 %v70, %v260
    %v262 = vpop.f32.mrb[0].mxu0
    %263 = vmatprep.mubr.bf16.mxu0 0
    %264 = vmatmul.mubr.bf16.gmra.mrb[0].mxu0 %v119
    %v265 = vpop.f32.mrb[0].mxu0
    %v266 = vadd.f32 %v70, %v265
    %v267 = vpop.f32.mrb[0].mxu0
    %v268 = vpop.f32.mrb[0].mxu0
    %v269 = vadd.f32 %v70, %v268
    %v270 = vpop.f32.mrb[0].mxu0
    %271 = vmatprep.mubr.bf16.mxu0 0
    %272 = vmatmul.mubr.bf16.gmra.mrb[0].mxu0 %v122
    %v273 = vpop.f32.mrb[0].mxu0
    %v274 = vadd.f32 %v70, %v273
    %v275 = vpop.f32.mrb[0].mxu0
    %v276 = vpop.f32.mrb[0].mxu0
    %v277 = vadd.f32 %v70, %v276
    %v278 = vpop.f32.mrb[0].mxu0
    %279 = vmatprep.mubr.bf16.mxu0 0
    %280 = vmatmul.mubr.bf16.gmra.mrb[0].mxu0 %v125
    %v281 = vpop.f32.mrb[0].mxu0
    %v282 = vadd.f32 %v70, %v281
    %v283 = vpop.f32.mrb[0].mxu0
    %v284 = vpop.f32.mrb[0].mxu0
    %v285 = vadd.f32 %v70, %v284
    %v286 = vpop.f32.mrb[0].mxu0
    %287 = vdwg.mxu0
    %vm288 = vcmask 261120
    %289 = vst.msk [vmem:[#allocation2] sm:$0xff] %vm288, %v162
    %290 = vst.msk [vmem:[#allocation2 + $0x8] sm:$0xff] %vm288, %v165
    %291 = vst.msk [vmem:[#allocation2 + $0x10] sm:$0xff] %vm288, %v170
    %292 = vst.msk [vmem:[#allocation2 + $0x18] sm:$0xff] %vm288, %v173
    %293 = vst.msk [vmem:[#allocation2 + $0x20] sm:$0xff] %vm288, %v178
    %294 = vst.msk [vmem:[#allocation2 + $0x28] sm:$0xff] %vm288, %v181
    %295 = vst.msk [vmem:[#allocation2 + $0x30] sm:$0xff] %vm288, %v186
    %296 = vst.msk [vmem:[#allocation2 + $0x38] sm:$0xff] %vm288, %v189
    %297 = vst.msk [vmem:[#allocation2 + $0x40] sm:$0xff] %vm288, %v194
    %298 = vst.msk [vmem:[#allocation2 + $0x48] sm:$0xff] %vm288, %v197
    %299 = vst.msk [vmem:[#allocation2 + $0x50] sm:$0xff] %vm288, %v202
    %300 = vst.msk [vmem:[#allocation2 + $0x58] sm:$0xff] %vm288, %v205
    %301 = vst.msk [vmem:[#allocation2 + $0x60] sm:$0xff] %vm288, %v210
    %302 = vst.msk [vmem:[#allocation2 + $0x68] sm:$0xff] %vm288, %v213
    %303 = vst.msk [vmem:[#allocation2 + $0x70] sm:$0xff] %vm288, %v218
    %304 = vst.msk [vmem:[#allocation2 + $0x78] sm:$0xff] %vm288, %v221
    %305 = vst.msk [vmem:[#allocation2 + $0x80] sm:$0xff] %vm288, %v226
    %306 = vst.msk [vmem:[#allocation2 + $0x88] sm:$0xff] %vm288, %v229
    %307 = vst.msk [vmem:[#allocation2 + $0x90] sm:$0xff] %vm288, %v234
    %308 = vst.msk [vmem:[#allocation2 + $0x98] sm:$0xff] %vm288, %v237
    %309 = vst.msk [vmem:[#allocation2 + $0xa0] sm:$0xff] %vm288, %v242
    %310 = vst.msk [vmem:[#allocation2 + $0xa8] sm:$0xff] %vm288, %v245
    %311 = vst.msk [vmem:[#allocation2 + $0xb0] sm:$0xff] %vm288, %v250
    %312 = vst.msk [vmem:[#allocation2 + $0xb8] sm:$0xff] %vm288, %v253
    %313 = vst.msk [vmem:[#allocation2 + $0xc0] sm:$0xff] %vm288, %v258
    %314 = vst.msk [vmem:[#allocation2 + $0xc8] sm:$0xff] %vm288, %v261
    %315 = vst.msk [vmem:[#allocation2 + $0xd0] sm:$0xff] %vm288, %v266
    %316 = vst.msk [vmem:[#allocation2 + $0xd8] sm:$0xff] %vm288, %v269
    %317 = vst.msk [vmem:[#allocation2 + $0xe0] sm:$0xff] %vm288, %v274
    %318 = vst.msk [vmem:[#allocation2 + $0xe8] sm:$0xff] %vm288, %v277
    %319 = vst.msk [vmem:[#allocation2 + $0xf0] sm:$0xff] %vm288, %v282
    %320 = vst.msk [vmem:[#allocation2 + $0xf8] sm:$0xff] %vm288, %v285
    // Predicated region
    $region14: #{adapool_forward.3} parent=1 // pred_check
      _
    $region15: #{adapool_forward.3} parent=1 // pred_check_branch
      %322 = sbr.rel (0) target = $region17
    $region16: #{adapool_forward.3} parent=1 // pred_region
      // Predicated region
      $region18: #{adapool_forward.3} parent=16 // pred_check
        _
      $region19: #{adapool_forward.3} parent=16 // pred_check_branch
        %324 = sbr.rel (0) target = $region21
      $region20: #{adapool_forward.3} parent=16 // pred_region
        // Predicated region
        $region22: #{adapool_forward.3} parent=20 // pred_check
          _
        $region23: #{adapool_forward.3} parent=20 // pred_check_branch
          %326 = sbr.rel (0) target = $region25
        $region24: #{adapool_forward.3} parent=20 // pred_region
          // Predicated region
          $region37: #{adapool_forward.3} parent=24 // pred_check
            _
          $region38: #{adapool_forward.3} parent=24 // pred_check_branch
            %375 = sbr.rel (0) target = $region40
          $region39: #{adapool_forward.3} parent=24 // pred_region
            loop: start=0, step=1, limit=1
            $region41: #{adapool_forward.3} parent=39 // loop_pre_header
              _
            $region42: #{adapool_forward.3} parent=39 // loop_header
              %s377 = sphi 0, %s381
              %p378 = scmp.ge.s32.totalorder %s377, 1
              %s382 = sphi [#allocation2], [#allocation2]
              %s383 = sphi %s3, %s3
            $region43: #{adapool_forward.3} parent=39 // loop_header_branch
              %380 = sbr.rel (%p378) target = $region47
            $region44: #{adapool_forward.3} parent=39 // loop_body
              %v384 = vld [vmem:[%s382] sm:$0xff]
              %385 = vst [vmem:[%s383] sm:$0xff] %v384
              %v386 = vld [vmem:[%s382 + $0x8] sm:$0xff]
              %387 = vst [vmem:[%s383 + $0x8] sm:$0xff] %v386
              %v388 = vld [vmem:[%s382 + $0x10] sm:$0xff]
              %389 = vst [vmem:[%s383 + $0x10] sm:$0xff] %v388
              %v390 = vld [vmem:[%s382 + $0x18] sm:$0xff]
              %391 = vst [vmem:[%s383 + $0x18] sm:$0xff] %v390
              %v392 = vld [vmem:[%s382 + $0x20] sm:$0xff]
              %393 = vst [vmem:[%s383 + $0x20] sm:$0xff] %v392
              %v394 = vld [vmem:[%s382 + $0x28] sm:$0xff]
              %395 = vst [vmem:[%s383 + $0x28] sm:$0xff] %v394
              %v396 = vld [vmem:[%s382 + $0x30] sm:$0xff]
              %397 = vst [vmem:[%s383 + $0x30] sm:$0xff] %v396
              %v398 = vld [vmem:[%s382 + $0x38] sm:$0xff]
              %399 = vst [vmem:[%s383 + $0x38] sm:$0xff] %v398
              %v400 = vld [vmem:[%s382 + $0x40] sm:$0xff]
              %401 = vst [vmem:[%s383 + $0x40] sm:$0xff] %v400
              %v402 = vld [vmem:[%s382 + $0x48] sm:$0xff]
              %403 = vst [vmem:[%s383 + $0x48] sm:$0xff] %v402
              %v404 = vld [vmem:[%s382 + $0x50] sm:$0xff]
              %405 = vst [vmem:[%s383 + $0x50] sm:$0xff] %v404
              %v406 = vld [vmem:[%s382 + $0x58] sm:$0xff]
              %407 = vst [vmem:[%s383 + $0x58] sm:$0xff] %v406
              %v408 = vld [vmem:[%s382 + $0x60] sm:$0xff]
              %409 = vst [vmem:[%s383 + $0x60] sm:$0xff] %v408
              %v410 = vld [vmem:[%s382 + $0x68] sm:$0xff]
              %411 = vst [vmem:[%s383 + $0x68] sm:$0xff] %v410
              %v412 = vld [vmem:[%s382 + $0x70] sm:$0xff]
              %413 = vst [vmem:[%s383 + $0x70] sm:$0xff] %v412
              %v414 = vld [vmem:[%s382 + $0x78] sm:$0xff]
              %415 = vst [vmem:[%s383 + $0x78] sm:$0xff] %v414
              %v416 = vld [vmem:[%s382 + $0x80] sm:$0xff]
              %417 = vst [vmem:[%s383 + $0x80] sm:$0xff] %v416
              %v418 = vld [vmem:[%s382 + $0x88] sm:$0xff]
              %419 = vst [vmem:[%s383 + $0x88] sm:$0xff] %v418
            $region45: #{adapool_forward.3} parent=39 // loop_footer
              %s381 = sadd.s32 1, %s377
            $region46: #{adapool_forward.3} parent=39 // loop_footer_branch
              %376 = sbr.rel target = $region42
            $region47: #{adapool_forward.3} parent=39 // loop_exit
              _
          $region40: #{adapool_forward.3} parent=24 // pred_fallthru
            _
          // Predicated region
          $region48: #{adapool_forward.3} parent=24 // pred_check
            _
          $region49: #{adapool_forward.3} parent=24 // pred_check_branch
            %421 = sbr.rel target = $region51
          $region50: #{adapool_forward.3} parent=24 // pred_region
            _
          $region51: #{adapool_forward.3} parent=24 // pred_fallthru
            _
        $region25: #{adapool_forward.3} parent=20 // pred_fallthru
          _
        // Predicated region
        $region26: #{adapool_forward.3} parent=20 // pred_check
          _
        $region27: #{adapool_forward.3} parent=20 // pred_check_branch
          %328 = sbr.rel target = $region29
        $region28: #{adapool_forward.3} parent=20 // pred_region
          loop: start=0, step=1, limit=1
          $region30: #{adapool_forward.3} parent=28 // loop_pre_header
            _
          $region31: #{adapool_forward.3} parent=28 // loop_header
            %s331 = sphi 0, %s335
            %p332 = scmp.ge.s32.totalorder %s331, 1
            %s336 = sphi [#allocation2], [#allocation2]
            %s337 = sphi %s3, %s3
          $region32: #{adapool_forward.3} parent=28 // loop_header_branch
            %334 = sbr.rel (%p332) target = $region36
          $region33: #{adapool_forward.3} parent=28 // loop_body
            %v338 = vld [vmem:[%s336] sm:$0xff]
            %339 = vst [vmem:[%s337] sm:$0xff] %v338
            %v340 = vld [vmem:[%s336 + $0x8] sm:$0xff]
            %341 = vst [vmem:[%s337 + $0x8] sm:$0xff] %v340
            %v342 = vld [vmem:[%s336 + $0x10] sm:$0xff]
            %343 = vst [vmem:[%s337 + $0x10] sm:$0xff] %v342
            %v344 = vld [vmem:[%s336 + $0x18] sm:$0xff]
            %345 = vst [vmem:[%s337 + $0x18] sm:$0xff] %v344
            %v346 = vld [vmem:[%s336 + $0x20] sm:$0xff]
            %347 = vst [vmem:[%s337 + $0x20] sm:$0xff] %v346
            %v348 = vld [vmem:[%s336 + $0x28] sm:$0xff]
            %349 = vst [vmem:[%s337 + $0x28] sm:$0xff] %v348
            %v350 = vld [vmem:[%s336 + $0x30] sm:$0xff]
            %351 = vst [vmem:[%s337 + $0x30] sm:$0xff] %v350
            %v352 = vld [vmem:[%s336 + $0x38] sm:$0xff]
            %353 = vst [vmem:[%s337 + $0x38] sm:$0xff] %v352
            %v354 = vld [vmem:[%s336 + $0x40] sm:$0xff]
            %355 = vst [vmem:[%s337 + $0x40] sm:$0xff] %v354
            %v356 = vld [vmem:[%s336 + $0x48] sm:$0xff]
            %357 = vst [vmem:[%s337 + $0x48] sm:$0xff] %v356
            %v358 = vld [vmem:[%s336 + $0x50] sm:$0xff]
            %359 = vst [vmem:[%s337 + $0x50] sm:$0xff] %v358
            %v360 = vld [vmem:[%s336 + $0x58] sm:$0xff]
            %361 = vst [vmem:[%s337 + $0x58] sm:$0xff] %v360
            %v362 = vld [vmem:[%s336 + $0x60] sm:$0xff]
            %363 = vst [vmem:[%s337 + $0x60] sm:$0xff] %v362
            %v364 = vld [vmem:[%s336 + $0x68] sm:$0xff]
            %365 = vst [vmem:[%s337 + $0x68] sm:$0xff] %v364
            %v366 = vld [vmem:[%s336 + $0x70] sm:$0xff]
            %367 = vst [vmem:[%s337 + $0x70] sm:$0xff] %v366
            %v368 = vld [vmem:[%s336 + $0x78] sm:$0xff]
            %369 = vst [vmem:[%s337 + $0x78] sm:$0xff] %v368
            %v370 = vld [vmem:[%s336 + $0x80] sm:$0xff]
            %371 = vst [vmem:[%s337 + $0x80] sm:$0xff] %v370
            %v372 = vld [vmem:[%s336 + $0x88] sm:$0xff]
            %373 = vst [vmem:[%s337 + $0x88] sm:$0xff] %v372
          $region34: #{adapool_forward.3} parent=28 // loop_footer
            %s335 = sadd.s32 1, %s331
          $region35: #{adapool_forward.3} parent=28 // loop_footer_branch
            %330 = sbr.rel target = $region31
          $region36: #{adapool_forward.3} parent=28 // loop_exit
            _
        $region29: #{adapool_forward.3} parent=20 // pred_fallthru
          _
      $region21: #{adapool_forward.3} parent=16 // pred_fallthru
        _
      %422 = vnop
    $region17: #{adapool_forward.3} parent=1 // pred_fallthru
      _
    // Predicated region
    $region52: #{adapool_forward.3} parent=1 // pred_check
      _
    $region53: #{adapool_forward.3} parent=1 // pred_check_branch
      %424 = sbr.rel (0) target = $region55
    $region54: #{adapool_forward.3} parent=1 // pred_region
      _
    $region55: #{adapool_forward.3} parent=1 // pred_fallthru
      _

// kernel: adapool_forward.2
$region0: #{adapool_forward.2}
  #allocation0 [shape = 'u32[]', space=smem, size = 0x4, offset = 0x4, fixed_abs, tag = 'smem constant byte address 0x4 - core index']
  #allocation1 [shape = 'u32[144,128]{1,0:T(1,128)}', space=vmem, size = 0x12000, scoped, tag = 'internal scratch']
  #allocation2 [shape = 'f32[16,32]{1,0:T(8,128)}', space=vmem, size = 0x2000, scoped, tag = 'scratch operand']
  %s0 = inlined_call_operand.vmem [shape: f32[192,16], index: 0, kind: input, shape index: {}]
  %s1 = inlined_call_operand.vmem [shape: bf16[16,32], index: 1, kind: input, shape index: {}]
  %s2 = inlined_call_operand.vmem [shape: f32[1,32], index: 2, kind: input, shape index: {}]
  %s3 = inlined_call_operand.vmem [shape: bf16[16,256], index: 3, kind: input, shape index: {}]
  %s4 = inlined_call_operand.vmem [shape: f32[8,1], index: 4, kind: input, shape index: {}]
  %s5 = inlined_call_operand.vmem [shape: bf16[8,8], index: 5, kind: input, shape index: {}]
  %s6 = inlined_call_operand.vmem [shape: bf16[32,64], index: 6, kind: input, shape index: {}]
  %s7 = inlined_call_operand.vmem [shape: bf16[32,64], index: 7, kind: input, shape index: {}]
  %s8 = inlined_call_operand.vmem [shape: f32[1,64], index: 8, kind: input, shape index: {}]
  %s9 = inlined_call_operand.vmem [shape: bf16[64,32], index: 9, kind: input, shape index: {}]
  %s10 = inlined_call_operand.vmem [shape: f32[1,32], index: 10, kind: input, shape index: {}]
  %s11 = inlined_call_operand.vmem [shape: bf16[32,128], index: 11, kind: input, shape index: {}]
  %s12 = inlined_call_operand.vmem [shape: f32[1,128], index: 12, kind: input, shape index: {}]
  %s13 = inlined_call_operand.vmem [shape: f32[192,32], index: 13, kind: output, shape index: {0}]
  %s14 = inlined_call_operand.vmem [shape: f32[8,128], index: 14, kind: output, shape index: {1}]
  %15 = xla_tuple %s13, %s14
  %s16 = sld [smem:[#allocation0]]
  $region112: #{adapool_forward.2} parent=0
    _
  %s18 = ssub.s32 1, %s16
  %s19 = scalar_select 0, %s18, %s16
  $region1: #{adapool_forward.2} parent=0
    #allocation3 [shape = 'u8[131072]{0}', space=vmem, size = 0x20000, scoped, tag = 'output window, operand 0, single buffered']
    // Predicated region
    $region2: #{adapool_forward.2} parent=1 // pred_check
      _
    $region3: #{adapool_forward.2} parent=1 // pred_check_branch
      %21 = sbr.rel (0) target = $region5
    $region4: #{adapool_forward.2} parent=1 // pred_region
      _
    $region5: #{adapool_forward.2} parent=1 // pred_fallthru
      _
    // Predicated region
    $region6: #{adapool_forward.2} parent=1 // pred_check
      _
    $region7: #{adapool_forward.2} parent=1 // pred_check_branch
      %23 = sbr.rel (0) target = $region9
    $region8: #{adapool_forward.2} parent=1 // pred_region
      _
    $region9: #{adapool_forward.2} parent=1 // pred_fallthru
      _
    // Predicated region
    $region10: #{adapool_forward.2} parent=1 // pred_check
      _
    $region11: #{adapool_forward.2} parent=1 // pred_check_branch
      %25 = sbr.rel (0) target = $region13
    $region12: #{adapool_forward.2} parent=1 // pred_region
      _
    $region13: #{adapool_forward.2} parent=1 // pred_fallthru
      _
    // Predicated region
    $region14: #{adapool_forward.2} parent=1 // pred_check
      _
    $region15: #{adapool_forward.2} parent=1 // pred_check_branch
      %27 = sbr.rel (0) target = $region17
    $region16: #{adapool_forward.2} parent=1 // pred_region
      _
    $region17: #{adapool_forward.2} parent=1 // pred_fallthru
      _
    // Predicated region
    $region18: #{adapool_forward.2} parent=1 // pred_check
      _
    $region19: #{adapool_forward.2} parent=1 // pred_check_branch
      %29 = sbr.rel (0) target = $region21
    $region20: #{adapool_forward.2} parent=1 // pred_region
      _
    $region21: #{adapool_forward.2} parent=1 // pred_fallthru
      _
    // Predicated region
    $region22: #{adapool_forward.2} parent=1 // pred_check
      _
    $region23: #{adapool_forward.2} parent=1 // pred_check_branch
      %31 = sbr.rel (0) target = $region25
    $region24: #{adapool_forward.2} parent=1 // pred_region
      _
    $region25: #{adapool_forward.2} parent=1 // pred_fallthru
      _
    // Predicated region
    $region26: #{adapool_forward.2} parent=1 // pred_check
      _
    $region27: #{adapool_forward.2} parent=1 // pred_check_branch
      %33 = sbr.rel (0) target = $region29
    $region28: #{adapool_forward.2} parent=1 // pred_region
      _
    $region29: #{adapool_forward.2} parent=1 // pred_fallthru
      _
    // Predicated region
    $region30: #{adapool_forward.2} parent=1 // pred_check
      _
    $region31: #{adapool_forward.2} parent=1 // pred_check_branch
      %35 = sbr.rel (0) target = $region33
    $region32: #{adapool_forward.2} parent=1 // pred_region
      _
    $region33: #{adapool_forward.2} parent=1 // pred_fallthru
      _
    // Predicated region
    $region34: #{adapool_forward.2} parent=1 // pred_check
      _
    $region35: #{adapool_forward.2} parent=1 // pred_check_branch
      %37 = sbr.rel (0) target = $region37
    $region36: #{adapool_forward.2} parent=1 // pred_region
      _
    $region37: #{adapool_forward.2} parent=1 // pred_fallthru
      _
    // Predicated region
    $region38: #{adapool_forward.2} parent=1 // pred_check
      _
    $region39: #{adapool_forward.2} parent=1 // pred_check_branch
      %39 = sbr.rel (0) target = $region41
    $region40: #{adapool_forward.2} parent=1 // pred_region
      _
    $region41: #{adapool_forward.2} parent=1 // pred_fallthru
      _
    // Predicated region
    $region42: #{adapool_forward.2} parent=1 // pred_check
      _
    $region43: #{adapool_forward.2} parent=1 // pred_check_branch
      %41 = sbr.rel (0) target = $region45
    $region44: #{adapool_forward.2} parent=1 // pred_region
      _
    $region45: #{adapool_forward.2} parent=1 // pred_fallthru
      _
    // Predicated region
    $region46: #{adapool_forward.2} parent=1 // pred_check
      _
    $region47: #{adapool_forward.2} parent=1 // pred_check_branch
      %43 = sbr.rel (0) target = $region49
    $region48: #{adapool_forward.2} parent=1 // pred_region
      _
    $region49: #{adapool_forward.2} parent=1 // pred_fallthru
      _
    // Predicated region
    $region50: #{adapool_forward.2} parent=1 // pred_check
      _
    $region51: #{adapool_forward.2} parent=1 // pred_check_branch
      %45 = sbr.rel (0) target = $region53
    $region52: #{adapool_forward.2} parent=1 // pred_region
      _
    $region53: #{adapool_forward.2} parent=1 // pred_fallthru
      _
    %p47 = scmp.eq.s32.totalorder 0, 0
    // Predicated region
    $region54: #{adapool_forward.2} parent=1 // pred_check
      %p48 = pneg %p47
    $region55: #{adapool_forward.2} parent=1 // pred_check_branch
      %50 = sbr.rel (%p48) target = $region57
    $region56: #{adapool_forward.2} parent=1 // pred_region
      %vm51 = vcmask 261120
      %52 = vst.msk [vmem:[#allocation2] sm:$0xff] %vm51, 0.0
      %53 = vst.msk [vmem:[#allocation2 + $0x8] sm:$0xff] %vm51, 0.0
    $region57: #{adapool_forward.2} parent=1 // pred_fallthru
      _
    %s54 = smul.u32 0, 256
    %v55 = vlaneseq
    %v56 = vshrl.u32 %v55, 7
    %v57 = vadd.s32 %v56, 8
    %v58 = vadd.s32 %v56, 16
    %v59 = vadd.s32 %v56, 24
    %v60 = vadd.s32 %v56, 32
    %v61 = vadd.s32 %v56, 40
    %v62 = vadd.s32 %v56, 48
    %v63 = vadd.s32 %v56, 56
    %v64 = vadd.s32 %v56, 64
    %v65 = vadd.s32 %v56, 72
    %v66 = vadd.s32 %v56, 80
    %v67 = vadd.s32 %v56, 88
    %v68 = vadd.s32 %v56, 96
    %v69 = vadd.s32 %v56, 104
    %v70 = vadd.s32 %v56, 112
    %v71 = vadd.s32 %v56, 120
    %v72 = vadd.s32 %v56, 128
    %v73 = vadd.s32 %v56, 136
    %v74 = vadd.s32 %v56, 144
    %v75 = vadd.s32 %v56, 152
    %v76 = vadd.s32 %v56, 160
    %v77 = vadd.s32 %v56, 168
    %v78 = vadd.s32 %v56, 176
    %v79 = vadd.s32 %v56, 184
    %v80 = vadd.s32 %v56, 192
    %v81 = vadd.s32 %v56, 200
    %v82 = vadd.s32 %v56, 208
    %v83 = vadd.s32 %v56, 216
    %v84 = vadd.s32 %v56, 224
    %v85 = vadd.s32 %v56, 232
    %v86 = vadd.s32 %v56, 240
    %v87 = vadd.s32 %v56, 248
    %v88 = vstv %s54
    %v89 = vadd.s32 %v88, %v56
    %v90 = vadd.s32 %v88, %v57
    %v91 = vadd.s32 %v88, %v58
    %v92 = vadd.s32 %v88, %v59
    %v93 = vadd.s32 %v88, %v60
    %v94 = vadd.s32 %v88, %v61
    %v95 = vadd.s32 %v88, %v62
    %v96 = vadd.s32 %v88, %v63
    %v97 = vadd.s32 %v88, %v64
    %v98 = vadd.s32 %v88, %v65
    %v99 = vadd.s32 %v88, %v66
    %v100 = vadd.s32 %v88, %v67
    %v101 = vadd.s32 %v88, %v68
    %v102 = vadd.s32 %v88, %v69
    %v103 = vadd.s32 %v88, %v70
    %v104 = vadd.s32 %v88, %v71
    %v105 = vadd.s32 %v88, %v72
    %v106 = vadd.s32 %v88, %v73
    %v107 = vadd.s32 %v88, %v74
    %v108 = vadd.s32 %v88, %v75
    %v109 = vadd.s32 %v88, %v76
    %v110 = vadd.s32 %v88, %v77
    %v111 = vadd.s32 %v88, %v78
    %v112 = vadd.s32 %v88, %v79
    %v113 = vadd.s32 %v88, %v80
    %v114 = vadd.s32 %v88, %v81
    %v115 = vadd.s32 %v88, %v82
    %v116 = vadd.s32 %v88, %v83
    %v117 = vadd.s32 %v88, %v84
    %v118 = vadd.s32 %v88, %v85
    %v119 = vadd.s32 %v88, %v86
    %v120 = vadd.s32 %v88, %v87
    %vm121 = vcmp.lt.s32.totalorder %v89, 192
    %vm122 = vcmp.lt.s32.totalorder %v90, 192
    %vm123 = vcmp.lt.s32.totalorder %v91, 192
    %vm124 = vcmp.lt.s32.totalorder %v92, 192
    %vm125 = vcmp.lt.s32.totalorder %v93, 192
    %vm126 = vcmp.lt.s32.totalorder %v94, 192
    %vm127 = vcmp.lt.s32.totalorder %v95, 192
    %vm128 = vcmp.lt.s32.totalorder %v96, 192
    %vm129 = vcmp.lt.s32.totalorder %v97, 192
    %vm130 = vcmp.lt.s32.totalorder %v98, 192
    %vm131 = vcmp.lt.s32.totalorder %v99, 192
    %vm132 = vcmp.lt.s32.totalorder %v100, 192
    %vm133 = vcmp.lt.s32.totalorder %v101, 192
    %vm134 = vcmp.lt.s32.totalorder %v102, 192
    %vm135 = vcmp.lt.s32.totalorder %v103, 192
    %vm136 = vcmp.lt.s32.totalorder %v104, 192
    %vm137 = vcmp.lt.s32.totalorder %v105, 192
    %vm138 = vcmp.lt.s32.totalorder %v106, 192
    %vm139 = vcmp.lt.s32.totalorder %v107, 192
    %vm140 = vcmp.lt.s32.totalorder %v108, 192
    %vm141 = vcmp.lt.s32.totalorder %v109, 192
    %vm142 = vcmp.lt.s32.totalorder %v110, 192
    %vm143 = vcmp.lt.s32.totalorder %v111, 192
    %vm144 = vcmp.lt.s32.totalorder %v112, 192
    %vm145 = vcmp.lt.s32.totalorder %v113, 192
    %vm146 = vcmp.lt.s32.totalorder %v114, 192
    %vm147 = vcmp.lt.s32.totalorder %v115, 192
    %vm148 = vcmp.lt.s32.totalorder %v116, 192
    %vm149 = vcmp.lt.s32.totalorder %v117, 192
    %vm150 = vcmp.lt.s32.totalorder %v118, 192
    %vm151 = vcmp.lt.s32.totalorder %v119, 192
    %vm152 = vcmp.lt.s32.totalorder %v120, 192
    %v153 = vld [vmem:[%s0] sm:$0xff]
    %v154 = vld [vmem:[%s0 + $0x8] sm:$0xff]
    %v155 = vld [vmem:[%s0 + $0x10] sm:$0xff]
    %v156 = vld [vmem:[%s0 + $0x18] sm:$0xff]
    %v157 = vld [vmem:[%s0 + $0x20] sm:$0xff]
    %v158 = vld [vmem:[%s0 + $0x28] sm:$0xff]
    %v159 = vld [vmem:[%s0 + $0x30] sm:$0xff]
    %v160 = vld [vmem:[%s0 + $0x38] sm:$0xff]
    %v161 = vld [vmem:[%s0 + $0x40] sm:$0xff]
    %v162 = vld [vmem:[%s0 + $0x48] sm:$0xff]
    %v163 = vld [vmem:[%s0 + $0x50] sm:$0xff]
    %v164 = vld [vmem:[%s0 + $0x58] sm:$0xff]
    %v165 = vld [vmem:[%s0 + $0x60] sm:$0xff]
    %v166 = vld [vmem:[%s0 + $0x68] sm:$0xff]
    %v167 = vld [vmem:[%s0 + $0x70] sm:$0xff]
    %v168 = vld [vmem:[%s0 + $0x78] sm:$0xff]
    %v169 = vld [vmem:[%s0 + $0x80] sm:$0xff]
    %v170 = vld [vmem:[%s0 + $0x88] sm:$0xff]
    %v171 = vld [vmem:[%s0 + $0x90] sm:$0xff]
    %v172 = vld [vmem:[%s0 + $0x98] sm:$0xff]
    %v173 = vld [vmem:[%s0 + $0xa0] sm:$0xff]
    %v174 = vld [vmem:[%s0 + $0xa8] sm:$0xff]
    %v175 = vld [vmem:[%s0 + $0xb0] sm:$0xff]
    %v176 = vld [vmem:[%s0 + $0xb8] sm:$0xff]
    %v177 = vld [vmem:[%s0 + $0xc0] sm:$0xff]
    %v178 = vld [vmem:[%s0 + $0xc8] sm:$0xff]
    %v179 = vld [vmem:[%s0 + $0xd0] sm:$0xff]
    %v180 = vld [vmem:[%s0 + $0xd8] sm:$0xff]
    %v181 = vld [vmem:[%s0 + $0xe0] sm:$0xff]
    %v182 = vld [vmem:[%s0 + $0xe8] sm:$0xff]
    %v183 = vld [vmem:[%s0 + $0xf0] sm:$0xff]
    %v184 = vld [vmem:[%s0 + $0xf8] sm:$0xff]
    %v185 = vsel %vm121, 1, 0
    %v186 = vsel %vm122, 1, 0
    %v187 = vsel %vm123, 1, 0
    %v188 = vsel %vm124, 1, 0
    %v189 = vsel %vm125, 1, 0
    %v190 = vsel %vm126, 1, 0
    %v191 = vsel %vm127, 1, 0
    %v192 = vsel %vm128, 1, 0
    %v193 = vsel %vm129, 1, 0
    %v194 = vsel %vm130, 1, 0
    %v195 = vsel %vm131, 1, 0
    %v196 = vsel %vm132, 1, 0
    %v197 = vsel %vm133, 1, 0
    %v198 = vsel %vm134, 1, 0
    %v199 = vsel %vm135, 1, 0
    %v200 = vsel %vm136, 1, 0
    %v201 = vsel %vm137, 1, 0
    %v202 = vsel %vm138, 1, 0
    %v203 = vsel %vm139, 1, 0
    %v204 = vsel %vm140, 1, 0
    %v205 = vsel %vm141, 1, 0
    %v206 = vsel %vm142, 1, 0
    %v207 = vsel %vm143, 1, 0
    %v208 = vsel %vm144, 1, 0
    %v209 = vsel %vm145, 1, 0
    %v210 = vsel %vm146, 1, 0
    %v211 = vsel %vm147, 1, 0
    %v212 = vsel %vm148, 1, 0
    %v213 = vsel %vm149, 1, 0
    %v214 = vsel %vm150, 1, 0
    %v215 = vsel %vm151, 1, 0
    %v216 = vsel %vm152, 1, 0
    %vm217 = vcmp.eq.s32.totalorder %v185, 1
    %vm218 = vcmp.eq.s32.totalorder %v186, 1
    %vm219 = vcmp.eq.s32.totalorder %v187, 1
    %vm220 = vcmp.eq.s32.totalorder %v188, 1
    %vm221 = vcmp.eq.s32.totalorder %v189, 1
    %vm222 = vcmp.eq.s32.totalorder %v190, 1
    %vm223 = vcmp.eq.s32.totalorder %v191, 1
    %vm224 = vcmp.eq.s32.totalorder %v192, 1
    %vm225 = vcmp.eq.s32.totalorder %v193, 1
    %vm226 = vcmp.eq.s32.totalorder %v194, 1
    %vm227 = vcmp.eq.s32.totalorder %v195, 1
    %vm228 = vcmp.eq.s32.totalorder %v196, 1
    %vm229 = vcmp.eq.s32.totalorder %v197, 1
    %vm230 = vcmp.eq.s32.totalorder %v198, 1
    %vm231 = vcmp.eq.s32.totalorder %v199, 1
    %vm232 = vcmp.eq.s32.totalorder %v200, 1
    %vm233 = vcmp.eq.s32.totalorder %v201, 1
    %vm234 = vcmp.eq.s32.totalorder %v202, 1
    %vm235 = vcmp.eq.s32.totalorder %v203, 1
    %vm236 = vcmp.eq.s32.totalorder %v204, 1
    %vm237 = vcmp.eq.s32.totalorder %v205, 1
    %vm238 = vcmp.eq.s32.totalorder %v206, 1
    %vm239 = vcmp.eq.s32.totalorder %v207, 1
    %vm240 = vcmp.eq.s32.totalorder %v208, 1
    %vm241 = vcmp.eq.s32.totalorder %v209, 1
    %vm242 = vcmp.eq.s32.totalorder %v210, 1
    %vm243 = vcmp.eq.s32.totalorder %v211, 1
    %vm244 = vcmp.eq.s32.totalorder %v212, 1
    %vm245 = vcmp.eq.s32.totalorder %v213, 1
    %vm246 = vcmp.eq.s32.totalorder %v214, 1
    %vm247 = vcmp.eq.s32.totalorder %v215, 1
    %vm248 = vcmp.eq.s32.totalorder %v216, 1
    %v249 = vsel %vm217, %v153, 0.0
    %v250 = vsel %vm218, %v154, 0.0
    %v251 = vsel %vm219, %v155, 0.0
    %v252 = vsel %vm220, %v156, 0.0
    %v253 = vsel %vm221, %v157, 0.0
    %v254 = vsel %vm222, %v158, 0.0
    %v255 = vsel %vm223, %v159, 0.0
    %v256 = vsel %vm224, %v160, 0.0
    %v257 = vsel %vm225, %v161, 0.0
    %v258 = vsel %vm226, %v162, 0.0
    %v259 = vsel %vm227, %v163, 0.0
    %v260 = vsel %vm228, %v164, 0.0
    %v261 = vsel %vm229, %v165, 0.0
    %v262 = vsel %vm230, %v166, 0.0
    %v263 = vsel %vm231, %v167, 0.0
    %v264 = vsel %vm232, %v168, 0.0
    %v265 = vsel %vm233, %v169, 0.0
    %v266 = vsel %vm234, %v170, 0.0
    %v267 = vsel %vm235, %v171, 0.0
    %v268 = vsel %vm236, %v172, 0.0
    %v269 = vsel %vm237, %v173, 0.0
    %v270 = vsel %vm238, %v174, 0.0
    %v271 = vsel %vm239, %v175, 0.0
    %v272 = vsel %vm240, %v176, 0.0
    %v273 = vsel %vm241, %v177, 0.0
    %v274 = vsel %vm242, %v178, 0.0
    %v275 = vsel %vm243, %v179, 0.0
    %v276 = vsel %vm244, %v180, 0.0
    %v277 = vsel %vm245, %v181, 0.0
    %v278 = vsel %vm246, %v182, 0.0
    %v279 = vsel %vm247, %v183, 0.0
    %v280 = vsel %vm248, %v184, 0.0
    %v281 = vpack.c.bf16 %v250, %v249
    %v282 = vpack.c.bf16 %v252, %v251
    %v283 = vpack.c.bf16 %v254, %v253
    %v284 = vpack.c.bf16 %v256, %v255
    %v285 = vpack.c.bf16 %v258, %v257
    %v286 = vpack.c.bf16 %v260, %v259
    %v287 = vpack.c.bf16 %v262, %v261
    %v288 = vpack.c.bf16 %v264, %v263
    %v289 = vpack.c.bf16 %v266, %v265
    %v290 = vpack.c.bf16 %v268, %v267
    %v291 = vpack.c.bf16 %v270, %v269
    %v292 = vpack.c.bf16 %v272, %v271
    %v293 = vpack.c.bf16 %v274, %v273
    %v294 = vpack.c.bf16 %v276, %v275
    %v295 = vpack.c.bf16 %v278, %v277
    %v296 = vpack.c.bf16 %v280, %v279
    %v297 = vld [vmem:[%s1] sm:$0xf]
    %v298 = vld [vmem:[%s1 + $0x4] sm:$0xf]
    %v299 = vld [vmem:[%s2] sm:$0x1]
    %v301 = vlaneseq
    %v302 = vshrl.u32 %v301, 7
    %v303 = vsub.s32 0, %v302
    %v304 = vrot.slane %v299, %v303
    %v308 = vunpack.c.l.b16 %v297
    %v309 = vunpack.c.l.b16 %v298
    %v310 = vpack.c.b16 %v309, %v308
    %vm312 = vcmask 130048
    %v314 = vsel %vm312, %v281, 0
    %v317 = vsel %vm312, %v282, 0
    %v320 = vsel %vm312, %v283, 0
    %v323 = vsel %vm312, %v284, 0
    %v326 = vsel %vm312, %v285, 0
    %v329 = vsel %vm312, %v286, 0
    %v332 = vsel %vm312, %v287, 0
    %v335 = vsel %vm312, %v288, 0
    %v338 = vsel %vm312, %v289, 0
    %v341 = vsel %vm312, %v290, 0
    %v344 = vsel %vm312, %v291, 0
    %v347 = vsel %vm312, %v292, 0
    %v350 = vsel %vm312, %v293, 0
    %v353 = vsel %vm312, %v294, 0
    %v356 = vsel %vm312, %v295, 0
    %v359 = vsel %vm312, %v296, 0
    %361 = vmatprep.subr.bf16.mxu0 0
    %362 = vmatpush1.bf16.msra.mxu0 %v310
    %363 = vmatprep.subr.bf16.mxu0 0
    %364 = vmatpush1.bf16.msra.mxu0 0
    %365 = vmatprep.subr.bf16.mxu0 0
    %366 = vmatpush1.bf16.msra.mxu0 0
    %367 = vmatprep.subr.bf16.mxu0 0
    %368 = vmatpush1.bf16.msra.mxu0 0
    %369 = vmatprep.subr.bf16.mxu0 0
    %370 = vmatpush1.bf16.msra.mxu0 0
    %371 = vmatprep.subr.bf16.mxu0 0
    %372 = vmatpush1.bf16.msra.mxu0 0
    %373 = vmatprep.subr.bf16.mxu0 0
    %374 = vmatpush1.bf16.msra.mxu0 0
    %375 = vmatprep.subr.bf16.mxu0 0
    %376 = vmatpush1.bf16.msra.mxu0 0
    %377 = vmatprep.subr.bf16.mxu0 0
    %378 = vmatpush1.bf16.msra.mxu0 0
    %379 = vmatprep.subr.bf16.mxu0 0
    %380 = vmatpush1.bf16.msra.mxu0 0
    %381 = vmatprep.subr.bf16.mxu0 0
    %382 = vmatpush1.bf16.msra.mxu0 0
    %383 = vmatprep.subr.bf16.mxu0 0
    %384 = vmatpush1.bf16.msra.mxu0 0
    %385 = vmatprep.subr.bf16.mxu0 0
    %386 = vmatpush1.bf16.msra.mxu0 0
    %387 = vmatprep.subr.bf16.mxu0 0
    %388 = vmatpush1.bf16.msra.mxu0 0
    %389 = vmatprep.subr.bf16.mxu0 0
    %390 = vmatpush1.bf16.msra.mxu0 0
    %391 = vmatprep.subr.bf16.mxu0 0
    %392 = vmatpush1.bf16.msra.mxu0 0
    %393 = vmatprep.mubr.bf16.mxu0 0
    %394 = vmatmul.mubr.bf16.gmra.mrb[0].mxu0 %v314
    %v395 = vpop.f32.mrb[0].mxu0
    %v396 = vadd.f32 %v304, %v395
    %v397 = vpop.f32.mrb[0].mxu0
    %v398 = vpop.f32.mrb[0].mxu0
    %v399 = vadd.f32 %v304, %v398
    %v400 = vpop.f32.mrb[0].mxu0
    %401 = vmatprep.mubr.bf16.mxu0 0
    %402 = vmatmul.mubr.bf16.gmra.mrb[0].mxu0 %v317
    %v403 = vpop.f32.mrb[0].mxu0
    %v404 = vadd.f32 %v304, %v403
    %v405 = vpop.f32.mrb[0].mxu0
    %v406 = vpop.f32.mrb[0].mxu0
    %v407 = vadd.f32 %v304, %v406
    %v408 = vpop.f32.mrb[0].mxu0
    %409 = vmatprep.mubr.bf16.mxu0 0
    %410 = vmatmul.mubr.bf16.gmra.mrb[0].mxu0 %v320
    %v411 = vpop.f32.mrb[0].mxu0
    %v412 = vadd.f32 %v304, %v411
    %v413 = vpop.f32.mrb[0].mxu0
    %v414 = vpop.f32.mrb[0].mxu0
    %v415 = vadd.f32 %v304, %v414
    %v416 = vpop.f32.mrb[0].mxu0
    %417 = vmatprep.mubr.bf16.mxu0 0
    %418 = vmatmul.mubr.bf16.gmra.mrb[0].mxu0 %v323
    %v419 = vpop.f32.mrb[0].mxu0
    %v420 = vadd.f32 %v304, %v419
    %v421 = vpop.f32.mrb[0].mxu0
    %v422 = vpop.f32.mrb[0].mxu0
    %v423 = vadd.f32 %v304, %v422
    %v424 = vpop.f32.mrb[0].mxu0
    %425 = vmatprep.mubr.bf16.mxu0 0
    %426 = vmatmul.mubr.bf16.gmra.mrb[0].mxu0 %v326
    %v427 = vpop.f32.mrb[0].mxu0
    %v428 = vadd.f32 %v304, %v427
    %v429 = vpop.f32.mrb[0].mxu0
    %v430 = vpop.f32.mrb[0].mxu0
    %v431 = vadd.f32 %v304, %v430
    %v432 = vpop.f32.mrb[0].mxu0
    %433 = vmatprep.mubr.bf16.mxu0 0
    %434 = vmatmul.mubr.bf16.gmra.mrb[0].mxu0 %v329
    %v435 = vpop.f32.mrb[0].mxu0
    %v436 = vadd.f32 %v304, %v435
    %v437 = vpop.f32.mrb[0].mxu0
    %v438 = vpop.f32.mrb[0].mxu0
    %v439 = vadd.f32 %v304, %v438
    %v440 = vpop.f32.mrb[0].mxu0
    %441 = vmatprep.mubr.bf16.mxu0 0
    %442 = vmatmul.mubr.bf16.gmra.mrb[0].mxu0 %v332
    %v443 = vpop.f32.mrb[0].mxu0
    %v444 = vadd.f32 %v304, %v443
    %v445 = vpop.f32.mrb[0].mxu0
    %v446 = vpop.f32.mrb[0].mxu0
    %v447 = vadd.f32 %v304, %v446
    %v448 = vpop.f32.mrb[0].mxu0
    %449 = vmatprep.mubr.bf16.mxu0 0
    %450 = vmatmul.mubr.bf16.gmra.mrb[0].mxu0 %v335
    %v451 = vpop.f32.mrb[0].mxu0
    %v452 = vadd.f32 %v304, %v451
    %v453 = vpop.f32.mrb[0].mxu0
    %v454 = vpop.f32.mrb[0].mxu0
    %v455 = vadd.f32 %v304, %v454
    %v456 = vpop.f32.mrb[0].mxu0
    %457 = vmatprep.mubr.bf16.mxu0 0
    %458 = vmatmul.mubr.bf16.gmra.mrb[0].mxu0 %v338
    %v459 = vpop.f32.mrb[0].mxu0
    %v460 = vadd.f32 %v304, %v459
    %v461 = vpop.f32.mrb[0].mxu0
    %v462 = vpop.f32.mrb[0].mxu0
    %v463 = vadd.f32 %v304, %v462
    %v464 = vpop.f32.mrb[0].mxu0
    %465 = vmatprep.mubr.bf16.mxu0 0
    %466 = vmatmul.mubr.bf16.gmra.mrb[0].mxu0 %v341
    %v467 = vpop.f32.mrb[0].mxu0
    %v468 = vadd.f32 %v304, %v467
    %v469 = vpop.f32.mrb[0].mxu0
    %v470 = vpop.f32.mrb[0].mxu0
    %v471 = vadd.f32 %v304, %v470
    %v472 = vpop.f32.mrb[0].mxu0
    %473 = vmatprep.mubr.bf16.mxu0 0
    %474 = vmatmul.mubr.bf16.gmra.mrb[0].mxu0 %v344
    %v475 = vpop.f32.mrb[0].mxu0
    %v476 = vadd.f32 %v304, %v475
    %v477 = vpop.f32.mrb[0].mxu0
    %v478 = vpop.f32.mrb[0].mxu0
    %v479 = vadd.f32 %v304, %v478
    %v480 = vpop.f32.mrb[0].mxu0
    %481 = vmatprep.mubr.bf16.mxu0 0
    %482 = vmatmul.mubr.bf16.gmra.mrb[0].mxu0 %v347
    %v483 = vpop.f32.mrb[0].mxu0
    %v484 = vadd.f32 %v304, %v483
    %v485 = vpop.f32.mrb[0].mxu0
    %v486 = vpop.f32.mrb[0].mxu0
    %v487 = vadd.f32 %v304, %v486
    %v488 = vpop.f32.mrb[0].mxu0
    %489 = vmatprep.mubr.bf16.mxu0 0
    %490 = vmatmul.mubr.bf16.gmra.mrb[0].mxu0 %v350
    %v491 = vpop.f32.mrb[0].mxu0
    %v492 = vadd.f32 %v304, %v491
    %v493 = vpop.f32.mrb[0].mxu0
    %v494 = vpop.f32.mrb[0].mxu0
    %v495 = vadd.f32 %v304, %v494
    %v496 = vpop.f32.mrb[0].mxu0
    %497 = vmatprep.mubr.bf16.mxu0 0
    %498 = vmatmul.mubr.bf16.gmra.mrb[0].mxu0 %v353
    %v499 = vpop.f32.mrb[0].mxu0
    %v500 = vadd.f32 %v304, %v499
    %v501 = vpop.f32.mrb[0].mxu0
    %v502 = vpop.f32.mrb[0].mxu0
    %v503 = vadd.f32 %v304, %v502
    %v504 = vpop.f32.mrb[0].mxu0
    %505 = vmatprep.mubr.bf16.mxu0 0
    %506 = vmatmul.mubr.bf16.gmra.mrb[0].mxu0 %v356
    %v507 = vpop.f32.mrb[0].mxu0
    %v508 = vadd.f32 %v304, %v507
    %v509 = vpop.f32.mrb[0].mxu0
    %v510 = vpop.f32.mrb[0].mxu0
    %v511 = vadd.f32 %v304, %v510
    %v512 = vpop.f32.mrb[0].mxu0
    %513 = vmatprep.mubr.bf16.mxu0 0
    %514 = vmatmul.mubr.bf16.gmra.mrb[0].mxu0 %v359
    %v515 = vpop.f32.mrb[0].mxu0
    %v516 = vadd.f32 %v304, %v515
    %v517 = vpop.f32.mrb[0].mxu0
    %v518 = vpop.f32.mrb[0].mxu0
    %v519 = vadd.f32 %v304, %v518
    %v520 = vpop.f32.mrb[0].mxu0
    %521 = vdwg.mxu0
    %vm522 = vcmask 261120
    %523 = vst.msk [vmem:[#allocation3] sm:$0xff] %vm522, %v396
    %524 = vst.msk [vmem:[#allocation3 + $0x8] sm:$0xff] %vm522, %v399
    %525 = vst.msk [vmem:[#allocation3 + $0x10] sm:$0xff] %vm522, %v404
    %526 = vst.msk [vmem:[#allocation3 + $0x18] sm:$0xff] %vm522, %v407
    %527 = vst.msk [vmem:[#allocation3 + $0x20] sm:$0xff] %vm522, %v412
    %528 = vst.msk [vmem:[#allocation3 + $0x28] sm:$0xff] %vm522, %v415
    %529 = vst.msk [vmem:[#allocation3 + $0x30] sm:$0xff] %vm522, %v420
    %530 = vst.msk [vmem:[#allocation3 + $0x38] sm:$0xff] %vm522, %v423
    %531 = vst.msk [vmem:[#allocation3 + $0x40] sm:$0xff] %vm522, %v428
    %532 = vst.msk [vmem:[#allocation3 + $0x48] sm:$0xff] %vm522, %v431
    %533 = vst.msk [vmem:[#allocation3 + $0x50] sm:$0xff] %vm522, %v436
    %534 = vst.msk [vmem:[#allocation3 + $0x58] sm:$0xff] %vm522, %v439
    %535 = vst.msk [vmem:[#allocation3 + $0x60] sm:$0xff] %vm522, %v444
    %536 = vst.msk [vmem:[#allocation3 + $0x68] sm:$0xff] %vm522, %v447
    %537 = vst.msk [vmem:[#allocation3 + $0x70] sm:$0xff] %vm522, %v452
    %538 = vst.msk [vmem:[#allocation3 + $0x78] sm:$0xff] %vm522, %v455
    %539 = vst.msk [vmem:[#allocation3 + $0x80] sm:$0xff] %vm522, %v460
    %540 = vst.msk [vmem:[#allocation3 + $0x88] sm:$0xff] %vm522, %v463
    %541 = vst.msk [vmem:[#allocation3 + $0x90] sm:$0xff] %vm522, %v468
    %542 = vst.msk [vmem:[#allocation3 + $0x98] sm:$0xff] %vm522, %v471
    %543 = vst.msk [vmem:[#allocation3 + $0xa0] sm:$0xff] %vm522, %v476
    %544 = vst.msk [vmem:[#allocation3 + $0xa8] sm:$0xff] %vm522, %v479
    %545 = vst.msk [vmem:[#allocation3 + $0xb0] sm:$0xff] %vm522, %v484
    %546 = vst.msk [vmem:[#allocation3 + $0xb8] sm:$0xff] %vm522, %v487
    %547 = vst.msk [vmem:[#allocation3 + $0xc0] sm:$0xff] %vm522, %v492
    %548 = vst.msk [vmem:[#allocation3 + $0xc8] sm:$0xff] %vm522, %v495
    %549 = vst.msk [vmem:[#allocation3 + $0xd0] sm:$0xff] %vm522, %v500
    %550 = vst.msk [vmem:[#allocation3 + $0xd8] sm:$0xff] %vm522, %v503
    %551 = vst.msk [vmem:[#allocation3 + $0xe0] sm:$0xff] %vm522, %v508
    %552 = vst.msk [vmem:[#allocation3 + $0xe8] sm:$0xff] %vm522, %v511
    %553 = vst.msk [vmem:[#allocation3 + $0xf0] sm:$0xff] %vm522, %v516
    %554 = vst.msk [vmem:[#allocation3 + $0xf8] sm:$0xff] %vm522, %v519
    %v555 = vld [vmem:[#allocation2] sm:$0xff]
    %v556 = vld [vmem:[#allocation2 + $0x8] sm:$0xff]
    %v557 = vld [vmem:[%s3] sm:$0xff]
    %v558 = vld [vmem:[%s3 + $0x8] sm:$0xff]
    %v559 = vpack.c.bf16 %v399, %v396
    %v560 = vpack.c.bf16 %v407, %v404
    %v561 = vpack.c.bf16 %v415, %v412
    %v562 = vpack.c.bf16 %v423, %v420
    %v563 = vpack.c.bf16 %v431, %v428
    %v564 = vpack.c.bf16 %v439, %v436
    %v565 = vpack.c.bf16 %v447, %v444
    %v566 = vpack.c.bf16 %v455, %v452
    %v567 = vpack.c.bf16 %v463, %v460
    %v568 = vpack.c.bf16 %v471, %v468
    %v569 = vpack.c.bf16 %v479, %v476
    %v570 = vpack.c.bf16 %v487, %v484
    %v571 = vpack.c.bf16 %v495, %v492
    %v572 = vpack.c.bf16 %v503, %v500
    %v573 = vpack.c.bf16 %v511, %v508
    %v574 = vpack.c.bf16 %v519, %v516
    %v577 = vunpack.c.l.b16 %v557
    %v578 = vunpack.c.h.b16 %v557
    %v579 = vunpack.c.l.b16 %v558
    %v580 = vunpack.c.h.b16 %v558
    %v581 = vpack.c.b16 %v579, %v577
    %v582 = vpack.c.b16 %v580, %v578
    %585 = vmatprep.subr.bf16.mxu0 0
    %586 = vmatpush1.bf16.msra.mxu0 %v559
    %587 = vmatprep.subr.bf16.mxu0 0
    %588 = vmatpush1.bf16.msra.mxu0 %v560
    %589 = vmatprep.subr.bf16.mxu0 0
    %590 = vmatpush1.bf16.msra.mxu0 %v561
    %591 = vmatprep.subr.bf16.mxu0 0
    %592 = vmatpush1.bf16.msra.mxu0 %v562
    %593 = vmatprep.subr.bf16.mxu0 0
    %594 = vmatpush1.bf16.msra.mxu0 %v563
    %595 = vmatprep.subr.bf16.mxu0 0
    %596 = vmatpush1.bf16.msra.mxu0 %v564
    %597 = vmatprep.subr.bf16.mxu0 0
    %598 = vmatpush1.bf16.msra.mxu0 %v565
    %599 = vmatprep.subr.bf16.mxu0 0
    %600 = vmatpush1.bf16.msra.mxu0 %v566
    %601 = vmatprep.subr.bf16.mxu0 0
    %602 = vmatpush1.bf16.msra.mxu0 %v567
    %603 = vmatprep.subr.bf16.mxu0 0
    %604 = vmatpush1.bf16.msra.mxu0 %v568
    %605 = vmatprep.subr.bf16.mxu0 0
    %606 = vmatpush1.bf16.msra.mxu0 %v569
    %607 = vmatprep.subr.bf16.mxu0 0
    %608 = vmatpush1.bf16.msra.mxu0 %v570
    %609 = vmatprep.subr.bf16.mxu0 0
    %610 = vmatpush1.bf16.msra.mxu0 %v571
    %611 = vmatprep.subr.bf16.mxu0 0
    %612 = vmatpush1.bf16.msra.mxu0 %v572
    %613 = vmatprep.subr.bf16.mxu0 0
    %614 = vmatpush1.bf16.msra.mxu0 %v573
    %615 = vmatprep.subr.bf16.mxu0 0
    %616 = vmatpush1.bf16.msra.mxu0 %v574
    %617 = vmatprep.mubr.bf16.mxu0 %v582
    %618 = vmatmul.mubr.bf16.gmra.mrb[0].mxu0 %v581
    %v619 = vpop.f32.mrb[0].mxu0
    %v620 = vadd.f32 0.0, %v619
    %v621 = vpop.f32.mrb[0].mxu0
    %v622 = vpop.f32.mrb[0].mxu0
    %v623 = vadd.f32 0.0, %v622
    %v624 = vpop.f32.mrb[0].mxu0
    %625 = vdwg.mxu0
    %v626 = vadd.f32 %v555, %v620
    %v627 = vadd.f32 %v556, %v623
    %628 = vst.msk [vmem:[#allocation2] sm:$0xff] %vm522, %v626
    %629 = vst.msk [vmem:[#allocation2 + $0x8] sm:$0xff] %vm522, %v627
    // Predicated region
    $region58: #{adapool_forward.2} parent=1 // pred_check
      %p630 = pneg %p47
    $region59: #{adapool_forward.2} parent=1 // pred_check_branch
      %632 = sbr.rel (%p630) target = $region61
    $region60: #{adapool_forward.2} parent=1 // pred_region
      %v633 = vld [vmem:[#allocation2] sm:$0xff]
      %v634 = vld [vmem:[%s4] sm:$0xff]
      %636 = vset.pattern.permute.xlu0 0
      %637 = vperm.xlu0 %636, %v634
      %v638 = vpop.permute.xlu0 %637
      %v640 = vmul.f32 %v633, %v638
      %v641 = vld [vmem:[#allocation2 + $0x8] sm:$0xff]
      %v642 = vpack.c.bf16 %v640, %v640
      %v643 = vld [vmem:[%s6] sm:$0xf]
      %v644 = vld [vmem:[%s6 + $0x4] sm:$0xf]
      %v645 = vld [vmem:[%s6 + $0x8] sm:$0xf]
      %v646 = vld [vmem:[%s6 + $0xc] sm:$0xf]
      %v651 = vunpack.c.l.b16 %v643
      %v652 = vunpack.c.l.b16 %v644
      %v653 = vunpack.c.l.b16 %v645
      %v654 = vunpack.c.l.b16 %v646
      %v655 = vpack.c.b16 %v652, %v651
      %v656 = vpack.c.b16 %v654, %v653
      %v660 = vsel %vm522, %v642, 0
      %662 = vmatprep.subr.bf16.mxu0 0
      %663 = vmatpush1.bf16.msra.mxu0 %v655
      %664 = vmatprep.subr.bf16.mxu0 0
      %665 = vmatpush1.bf16.msra.mxu0 %v656
      %666 = vmatprep.subr.bf16.mxu0 0
      %667 = vmatpush1.bf16.msra.mxu0 0
      %668 = vmatprep.subr.bf16.mxu0 0
      %669 = vmatpush1.bf16.msra.mxu0 0
      %670 = vmatprep.subr.bf16.mxu0 0
      %671 = vmatpush1.bf16.msra.mxu0 0
      %672 = vmatprep.subr.bf16.mxu0 0
      %673 = vmatpush1.bf16.msra.mxu0 0
      %674 = vmatprep.subr.bf16.mxu0 0
      %675 = vmatpush1.bf16.msra.mxu0 0
      %676 = vmatprep.subr.bf16.mxu0 0
      %677 = vmatpush1.bf16.msra.mxu0 0
      %678 = vmatprep.subr.bf16.mxu0 0
      %679 = vmatpush1.bf16.msra.mxu0 0
      %680 = vmatprep.subr.bf16.mxu0 0
      %681 = vmatpush1.bf16.msra.mxu0 0
      %682 = vmatprep.subr.bf16.mxu0 0
      %683 = vmatpush1.bf16.msra.mxu0 0
      %684 = vmatprep.subr.bf16.mxu0 0
      %685 = vmatpush1.bf16.msra.mxu0 0
      %686 = vmatprep.subr.bf16.mxu0 0
      %687 = vmatpush1.bf16.msra.mxu0 0
      %688 = vmatprep.subr.bf16.mxu0 0
      %689 = vmatpush1.bf16.msra.mxu0 0
      %690 = vmatprep.subr.bf16.mxu0 0
      %691 = vmatpush1.bf16.msra.mxu0 0
      %692 = vmatprep.subr.bf16.mxu0 0
      %693 = vmatpush1.bf16.msra.mxu0 0
      %694 = vmatprep.mubr.bf16.mxu0 0
      %695 = vmatmul.mubr.bf16.gmra.mrb[0].mxu0 %v660
      %v696 = vpop.f32.mrb[0].mxu0
      %v697 = vadd.f32 0.0, %v696
      %v698 = vpop.f32.mrb[0].mxu0
      %v699 = vpop.f32.mrb[0].mxu0
      %v700 = vpop.f32.mrb[0].mxu0
      %701 = vdwg.mxu0
      %v702 = vld [vmem:[%s5] sm:$0xf]
      %v703 = vpack.c.bf16 %v697, %v697
      %v704 = vpack.c.bf16 %v641, %v641
      %v705 = vld [vmem:[%s7] sm:$0xf]
      %v706 = vld [vmem:[%s7 + $0x4] sm:$0xf]
      %v707 = vld [vmem:[%s7 + $0x8] sm:$0xf]
      %v708 = vld [vmem:[%s7 + $0xc] sm:$0xf]
      %v713 = vunpack.c.l.b16 %v705
      %v714 = vunpack.c.l.b16 %v706
      %v715 = vunpack.c.l.b16 %v707
      %v716 = vunpack.c.l.b16 %v708
      %v717 = vpack.c.b16 %v714, %v713
      %v718 = vpack.c.b16 %v716, %v715
      %v722 = vsel %vm522, %v704, 0
      %724 = vmatprep.subr.bf16.mxu0 0
      %725 = vmatpush1.bf16.msra.mxu0 %v717
      %726 = vmatprep.subr.bf16.mxu0 0
      %727 = vmatpush1.bf16.msra.mxu0 %v718
      %728 = vmatprep.subr.bf16.mxu0 0
      %729 = vmatpush1.bf16.msra.mxu0 0
      %730 = vmatprep.subr.bf16.mxu0 0
      %731 = vmatpush1.bf16.msra.mxu0 0
      %732 = vmatprep.subr.bf16.mxu0 0
      %733 = vmatpush1.bf16.msra.mxu0 0
      %734 = vmatprep.subr.bf16.mxu0 0
      %735 = vmatpush1.bf16.msra.mxu0 0
      %736 = vmatprep.subr.bf16.mxu0 0
      %737 = vmatpush1.bf16.msra.mxu0 0
      %738 = vmatprep.subr.bf16.mxu0 0
      %739 = vmatpush1.bf16.msra.mxu0 0
      %740 = vmatprep.subr.bf16.mxu0 0
      %741 = vmatpush1.bf16.msra.mxu0 0
      %742 = vmatprep.subr.bf16.mxu0 0
      %743 = vmatpush1.bf16.msra.mxu0 0
      %744 = vmatprep.subr.bf16.mxu0 0
      %745 = vmatpush1.bf16.msra.mxu0 0
      %746 = vmatprep.subr.bf16.mxu0 0
      %747 = vmatpush1.bf16.msra.mxu0 0
      %748 = vmatprep.subr.bf16.mxu0 0
      %749 = vmatpush1.bf16.msra.mxu0 0
      %750 = vmatprep.subr.bf16.mxu0 0
      %751 = vmatpush1.bf16.msra.mxu0 0
      %752 = vmatprep.subr.bf16.mxu0 0
      %753 = vmatpush1.bf16.msra.mxu0 0
      %754 = vmatprep.subr.bf16.mxu0 0
      %755 = vmatpush1.bf16.msra.mxu0 0
      %756 = vmatprep.mubr.bf16.mxu0 0
      %757 = vmatmul.mubr.bf16.gmra.mrb[0].mxu0 %v722
      %v758 = vpop.f32.mrb[0].mxu0
      %v759 = vadd.f32 0.0, %v758
      %v760 = vpop.f32.mrb[0].mxu0
      %v761 = vpop.f32.mrb[0].mxu0
      %v762 = vpop.f32.mrb[0].mxu0
      %763 = vdwg.mxu0
      %vm764 = vcmask 64512
      %v766 = vsel %vm764, %v702, 0
      %vm768 = vcmask 1043456
      %v770 = vsel %vm768, %v703, 0
      %772 = vmatprep.subr.bf16.mxu0 0
      %773 = vmatpush1.bf16.msra.mxu0 %v770
      %774 = vmatprep.subr.bf16.mxu0 0
      %775 = vmatpush1.bf16.msra.mxu0 0
      %776 = vmatprep.subr.bf16.mxu0 0
      %777 = vmatpush1.bf16.msra.mxu0 0
      %778 = vmatprep.subr.bf16.mxu0 0
      %779 = vmatpush1.bf16.msra.mxu0 0
      %780 = vmatprep.subr.bf16.mxu0 0
      %781 = vmatpush1.bf16.msra.mxu0 0
      %782 = vmatprep.subr.bf16.mxu0 0
      %783 = vmatpush1.bf16.msra.mxu0 0
      %784 = vmatprep.subr.bf16.mxu0 0
      %785 = vmatpush1.bf16.msra.mxu0 0
      %786 = vmatprep.subr.bf16.mxu0 0
      %787 = vmatpush1.bf16.msra.mxu0 0
      %788 = vmatprep.subr.bf16.mxu0 0
      %789 = vmatpush1.bf16.msra.mxu0 0
      %790 = vmatprep.subr.bf16.mxu0 0
      %791 = vmatpush1.bf16.msra.mxu0 0
      %792 = vmatprep.subr.bf16.mxu0 0
      %793 = vmatpush1.bf16.msra.mxu0 0
      %794 = vmatprep.subr.bf16.mxu0 0
      %795 = vmatpush1.bf16.msra.mxu0 0
      %796 = vmatprep.subr.bf16.mxu0 0
      %797 = vmatpush1.bf16.msra.mxu0 0
      %798 = vmatprep.subr.bf16.mxu0 0
      %799 = vmatpush1.bf16.msra.mxu0 0
      %800 = vmatprep.subr.bf16.mxu0 0
      %801 = vmatpush1.bf16.msra.mxu0 0
      %802 = vmatprep.subr.bf16.mxu0 0
      %803 = vmatpush1.bf16.msra.mxu0 0
      %804 = vmatprep.mubr.bf16.mxu0 0
      %805 = vmatmul.mubr.bf16.gmra.mrb[0].mxu0 %v766
      %v806 = vpop.f32.mrb[0].mxu0
      %v807 = vadd.f32 %v759, %v806
      %v808 = vpop.f32.mrb[0].mxu0
      %v809 = vpop.f32.mrb[0].mxu0
      %v810 = vpop.f32.mrb[0].mxu0
      %811 = vdwg.mxu0
      %v812 = vld [vmem:[%s8] sm:$0x1]
      %v814 = vlaneseq
      %v815 = vshrl.u32 %v814, 7
      %v816 = vsub.s32 0, %v815
      %v817 = vrot.slane %v812, %v816
      %v819 = vadd.f32 %v807, %v817
      %v820 = vmax.f32 %v819, 0.0
      %v821 = vpack.c.bf16 %v820, %v820
      %v822 = vld [vmem:[%s9] sm:$0xf]
      %v823 = vld [vmem:[%s9 + $0x4] sm:$0xf]
      %v824 = vld [vmem:[%s9 + $0x8] sm:$0xf]
      %v825 = vld [vmem:[%s9 + $0xc] sm:$0xf]
      %v826 = vld [vmem:[%s9 + $0x10] sm:$0xf]
      %v827 = vld [vmem:[%s9 + $0x14] sm:$0xf]
      %v828 = vld [vmem:[%s9 + $0x18] sm:$0xf]
      %v829 = vld [vmem:[%s9 + $0x1c] sm:$0xf]
      %v830 = vld [vmem:[%s10] sm:$0x1]
      %v832 = vlaneseq
      %v833 = vshrl.u32 %v832, 7
      %v834 = vsub.s32 0, %v833
      %v835 = vrot.slane %v830, %v834
      %v845 = vunpack.c.l.b16 %v822
      %v846 = vunpack.c.l.b16 %v823
      %v847 = vunpack.c.l.b16 %v824
      %v848 = vunpack.c.l.b16 %v825
      %v849 = vunpack.c.l.b16 %v826
      %v850 = vunpack.c.l.b16 %v827
      %v851 = vunpack.c.l.b16 %v828
      %v852 = vunpack.c.l.b16 %v829
      %v853 = vpack.c.b16 %v846, %v845
      %v854 = vpack.c.b16 %v848, %v847
      %v855 = vpack.c.b16 %v850, %v849
      %v856 = vpack.c.b16 %v852, %v851
      %vm861 = vcmask 523264
      %v863 = vsel %vm861, %v821, 0
      %865 = vmatprep.subr.bf16.mxu0 0
      %866 = vmatpush1.bf16.msra.mxu0 %v853
      %867 = vmatprep.subr.bf16.mxu0 0
      %868 = vmatpush1.bf16.msra.mxu0 %v854
      %869 = vmatprep.subr.bf16.mxu0 0
      %870 = vmatpush1.bf16.msra.mxu0 %v855
      %871 = vmatprep.subr.bf16.mxu0 0
      %872 = vmatpush1.bf16.msra.mxu0 %v856
      %873 = vmatprep.subr.bf16.mxu0 0
      %874 = vmatpush1.bf16.msra.mxu0 0
      %875 = vmatprep.subr.bf16.mxu0 0
      %876 = vmatpush1.bf16.msra.mxu0 0
      %877 = vmatprep.subr.bf16.mxu0 0
      %878 = vmatpush1.bf16.msra.mxu0 0
      %879 = vmatprep.subr.bf16.mxu0 0
      %880 = vmatpush1.bf16.msra.mxu0 0
      %881 = vmatprep.subr.bf16.mxu0 0
      %882 = vmatpush1.bf16.msra.mxu0 0
      %883 = vmatprep.subr.bf16.mxu0 0
      %884 = vmatpush1.bf16.msra.mxu0 0
      %885 = vmatprep.subr.bf16.mxu0 0
      %886 = vmatpush1.bf16.msra.mxu0 0
      %887 = vmatprep.subr.bf16.mxu0 0
      %888 = vmatpush1.bf16.msra.mxu0 0
      %889 = vmatprep.subr.bf16.mxu0 0
      %890 = vmatpush1.bf16.msra.mxu0 0
      %891 = vmatprep.subr.bf16.mxu0 0
      %892 = vmatpush1.bf16.msra.mxu0 0
      %893 = vmatprep.subr.bf16.mxu0 0
      %894 = vmatpush1.bf16.msra.mxu0 0
      %895 = vmatprep.subr.bf16.mxu0 0
      %896 = vmatpush1.bf16.msra.mxu0 0
      %897 = vmatprep.mubr.bf16.mxu0 0
      %898 = vmatmul.mubr.bf16.gmra.mrb[0].mxu0 %v863
      %v899 = vpop.f32.mrb[0].mxu0
      %v900 = vadd.f32 %v835, %v899
      %v901 = vpop.f32.mrb[0].mxu0
      %v902 = vpop.f32.mrb[0].mxu0
      %v903 = vpop.f32.mrb[0].mxu0
      %904 = vdwg.mxu0
      %v905 = vmax.f32 %v900, 0.0
      %v906 = vpack.c.bf16 %v905, %v905
      %v907 = vld [vmem:[%s11] sm:$0xf]
      %v908 = vld [vmem:[%s11 + $0x4] sm:$0xf]
      %v909 = vld [vmem:[%s11 + $0x8] sm:$0xf]
      %v910 = vld [vmem:[%s11 + $0xc] sm:$0xf]
      %v911 = vld [vmem:[%s12] sm:$0x1]
      %v913 = vlaneseq
      %v914 = vshrl.u32 %v913, 7
      %v915 = vsub.s32 0, %v914
      %v916 = vrot.slane %v911, %v915
      %v922 = vunpack.c.l.b16 %v907
      %v923 = vunpack.c.l.b16 %v908
      %v924 = vunpack.c.l.b16 %v909
      %v925 = vunpack.c.l.b16 %v910
      %v926 = vpack.c.b16 %v923, %v922
      %v927 = vpack.c.b16 %v925, %v924
      %v931 = vsel %vm522, %v906, 0
      %933 = vmatprep.subr.bf16.mxu0 0
      %934 = vmatpush1.bf16.msra.mxu0 %v926
      %935 = vmatprep.subr.bf16.mxu0 0
      %936 = vmatpush1.bf16.msra.mxu0 %v927
      %937 = vmatprep.subr.bf16.mxu0 0
      %938 = vmatpush1.bf16.msra.mxu0 0
      %939 = vmatprep.subr.bf16.mxu0 0
      %940 = vmatpush1.bf16.msra.mxu0 0
      %941 = vmatprep.subr.bf16.mxu0 0
      %942 = vmatpush1.bf16.msra.mxu0 0
      %943 = vmatprep.subr.bf16.mxu0 0
      %944 = vmatpush1.bf16.msra.mxu0 0
      %945 = vmatprep.subr.bf16.mxu0 0
      %946 = vmatpush1.bf16.msra.mxu0 0
      %947 = vmatprep.subr.bf16.mxu0 0
      %948 = vmatpush1.bf16.msra.mxu0 0
      %949 = vmatprep.subr.bf16.mxu0 0
      %950 = vmatpush1.bf16.msra.mxu0 0
      %951 = vmatprep.subr.bf16.mxu0 0
      %952 = vmatpush1.bf16.msra.mxu0 0
      %953 = vmatprep.subr.bf16.mxu0 0
      %954 = vmatpush1.bf16.msra.mxu0 0
      %955 = vmatprep.subr.bf16.mxu0 0
      %956 = vmatpush1.bf16.msra.mxu0 0
      %957 = vmatprep.subr.bf16.mxu0 0
      %958 = vmatpush1.bf16.msra.mxu0 0
      %959 = vmatprep.subr.bf16.mxu0 0
      %960 = vmatpush1.bf16.msra.mxu0 0
      %961 = vmatprep.subr.bf16.mxu0 0
      %962 = vmatpush1.bf16.msra.mxu0 0
      %963 = vmatprep.subr.bf16.mxu0 0
      %964 = vmatpush1.bf16.msra.mxu0 0
      %965 = vmatprep.mubr.bf16.mxu0 0
      %966 = vmatmul.mubr.bf16.gmra.mrb[0].mxu0 %v931
      %v967 = vpop.f32.mrb[0].mxu0
      %v968 = vadd.f32 %v916, %v967
      %v969 = vpop.f32.mrb[0].mxu0
      %v970 = vpop.f32.mrb[0].mxu0
      %v971 = vpop.f32.mrb[0].mxu0
      %972 = vdwg.mxu0
      %973 = vst [vmem:[%s14] sm:$0xff] %v968
    $region61: #{adapool_forward.2} parent=1 // pred_fallthru
      _
    // Predicated region
    $region62: #{adapool_forward.2} parent=1 // pred_check
      _
    $region63: #{adapool_forward.2} parent=1 // pred_check_branch
      %975 = sbr.rel (0) target = $region65
    $region64: #{adapool_forward.2} parent=1 // pred_region
      // Predicated region
      $region66: #{adapool_forward.2} parent=64 // pred_check
        _
      $region67: #{adapool_forward.2} parent=64 // pred_check_branch
        %977 = sbr.rel (0) target = $region69
      $region68: #{adapool_forward.2} parent=64 // pred_region
        // Predicated region
        $region70: #{adapool_forward.2} parent=68 // pred_check
          _
        $region71: #{adapool_forward.2} parent=68 // pred_check_branch
          %979 = sbr.rel (0) target = $region73
        $region72: #{adapool_forward.2} parent=68 // pred_region
          // Predicated region
          $region85: #{adapool_forward.2} parent=72 // pred_check
            _
          $region86: #{adapool_forward.2} parent=72 // pred_check_branch
            %1040 = sbr.rel (0) target = $region88
          $region87: #{adapool_forward.2} parent=72 // pred_region
            loop: start=0, step=1, limit=1
            $region89: #{adapool_forward.2} parent=87 // loop_pre_header
              _
            $region90: #{adapool_forward.2} parent=87 // loop_header
              %s1042 = sphi 0, %s1046
              %p1043 = scmp.ge.s32.totalorder %s1042, 1
              %s1047 = sphi [#allocation3], [#allocation3]
              %s1048 = sphi %s13, %s13
            $region91: #{adapool_forward.2} parent=87 // loop_header_branch
              %1045 = sbr.rel (%p1043) target = $region95
            $region92: #{adapool_forward.2} parent=87 // loop_body
              %v1049 = vld [vmem:[%s1047] sm:$0xff]
              %1050 = vst [vmem:[%s1048] sm:$0xff] %v1049
              %v1051 = vld [vmem:[%s1047 + $0x8] sm:$0xff]
              %1052 = vst [vmem:[%s1048 + $0x8] sm:$0xff] %v1051
              %v1053 = vld [vmem:[%s1047 + $0x10] sm:$0xff]
              %1054 = vst [vmem:[%s1048 + $0x10] sm:$0xff] %v1053
              %v1055 = vld [vmem:[%s1047 + $0x18] sm:$0xff]
              %1056 = vst [vmem:[%s1048 + $0x18] sm:$0xff] %v1055
              %v1057 = vld [vmem:[%s1047 + $0x20] sm:$0xff]
              %1058 = vst [vmem:[%s1048 + $0x20] sm:$0xff] %v1057
              %v1059 = vld [vmem:[%s1047 + $0x28] sm:$0xff]
              %1060 = vst [vmem:[%s1048 + $0x28] sm:$0xff] %v1059
              %v1061 = vld [vmem:[%s1047 + $0x30] sm:$0xff]
              %1062 = vst [vmem:[%s1048 + $0x30] sm:$0xff] %v1061
              %v1063 = vld [vmem:[%s1047 + $0x38] sm:$0xff]
              %1064 = vst [vmem:[%s1048 + $0x38] sm:$0xff] %v1063
              %v1065 = vld [vmem:[%s1047 + $0x40] sm:$0xff]
              %1066 = vst [vmem:[%s1048 + $0x40] sm:$0xff] %v1065
              %v1067 = vld [vmem:[%s1047 + $0x48] sm:$0xff]
              %1068 = vst [vmem:[%s1048 + $0x48] sm:$0xff] %v1067
              %v1069 = vld [vmem:[%s1047 + $0x50] sm:$0xff]
              %1070 = vst [vmem:[%s1048 + $0x50] sm:$0xff] %v1069
              %v1071 = vld [vmem:[%s1047 + $0x58] sm:$0xff]
              %1072 = vst [vmem:[%s1048 + $0x58] sm:$0xff] %v1071
              %v1073 = vld [vmem:[%s1047 + $0x60] sm:$0xff]
              %1074 = vst [vmem:[%s1048 + $0x60] sm:$0xff] %v1073
              %v1075 = vld [vmem:[%s1047 + $0x68] sm:$0xff]
              %1076 = vst [vmem:[%s1048 + $0x68] sm:$0xff] %v1075
              %v1077 = vld [vmem:[%s1047 + $0x70] sm:$0xff]
              %1078 = vst [vmem:[%s1048 + $0x70] sm:$0xff] %v1077
              %v1079 = vld [vmem:[%s1047 + $0x78] sm:$0xff]
              %1080 = vst [vmem:[%s1048 + $0x78] sm:$0xff] %v1079
              %v1081 = vld [vmem:[%s1047 + $0x80] sm:$0xff]
              %1082 = vst [vmem:[%s1048 + $0x80] sm:$0xff] %v1081
              %v1083 = vld [vmem:[%s1047 + $0x88] sm:$0xff]
              %1084 = vst [vmem:[%s1048 + $0x88] sm:$0xff] %v1083
              %v1085 = vld [vmem:[%s1047 + $0x90] sm:$0xff]
              %1086 = vst [vmem:[%s1048 + $0x90] sm:$0xff] %v1085
              %v1087 = vld [vmem:[%s1047 + $0x98] sm:$0xff]
              %1088 = vst [vmem:[%s1048 + $0x98] sm:$0xff] %v1087
              %v1089 = vld [vmem:[%s1047 + $0xa0] sm:$0xff]
              %1090 = vst [vmem:[%s1048 + $0xa0] sm:$0xff] %v1089
              %v1091 = vld [vmem:[%s1047 + $0xa8] sm:$0xff]
              %1092 = vst [vmem:[%s1048 + $0xa8] sm:$0xff] %v1091
              %v1093 = vld [vmem:[%s1047 + $0xb0] sm:$0xff]
              %1094 = vst [vmem:[%s1048 + $0xb0] sm:$0xff] %v1093
              %v1095 = vld [vmem:[%s1047 + $0xb8] sm:$0xff]
              %1096 = vst [vmem:[%s1048 + $0xb8] sm:$0xff] %v1095
            $region93: #{adapool_forward.2} parent=87 // loop_footer
              %s1046 = sadd.s32 1, %s1042
            $region94: #{adapool_forward.2} parent=87 // loop_footer_branch
              %1041 = sbr.rel target = $region90
            $region95: #{adapool_forward.2} parent=87 // loop_exit
              _
          $region88: #{adapool_forward.2} parent=72 // pred_fallthru
            _
          // Predicated region
          $region96: #{adapool_forward.2} parent=72 // pred_check
            _
          $region97: #{adapool_forward.2} parent=72 // pred_check_branch
            %1098 = sbr.rel target = $region99
          $region98: #{adapool_forward.2} parent=72 // pred_region
            _
          $region99: #{adapool_forward.2} parent=72 // pred_fallthru
            _
        $region73: #{adapool_forward.2} parent=68 // pred_fallthru
          _
        // Predicated region
        $region74: #{adapool_forward.2} parent=68 // pred_check
          _
        $region75: #{adapool_forward.2} parent=68 // pred_check_branch
          %981 = sbr.rel target = $region77
        $region76: #{adapool_forward.2} parent=68 // pred_region
          loop: start=0, step=1, limit=1
          $region78: #{adapool_forward.2} parent=76 // loop_pre_header
            _
          $region79: #{adapool_forward.2} parent=76 // loop_header
            %s984 = sphi 0, %s988
            %p985 = scmp.ge.s32.totalorder %s984, 1
            %s989 = sphi [#allocation3], [#allocation3]
            %s990 = sphi %s13, %s13
          $region80: #{adapool_forward.2} parent=76 // loop_header_branch
            %987 = sbr.rel (%p985) target = $region84
          $region81: #{adapool_forward.2} parent=76 // loop_body
            %v991 = vld [vmem:[%s989] sm:$0xff]
            %992 = vst [vmem:[%s990] sm:$0xff] %v991
            %v993 = vld [vmem:[%s989 + $0x8] sm:$0xff]
            %994 = vst [vmem:[%s990 + $0x8] sm:$0xff] %v993
            %v995 = vld [vmem:[%s989 + $0x10] sm:$0xff]
            %996 = vst [vmem:[%s990 + $0x10] sm:$0xff] %v995
            %v997 = vld [vmem:[%s989 + $0x18] sm:$0xff]
            %998 = vst [vmem:[%s990 + $0x18] sm:$0xff] %v997
            %v999 = vld [vmem:[%s989 + $0x20] sm:$0xff]
            %1000 = vst [vmem:[%s990 + $0x20] sm:$0xff] %v999
            %v1001 = vld [vmem:[%s989 + $0x28] sm:$0xff]
            %1002 = vst [vmem:[%s990 + $0x28] sm:$0xff] %v1001
            %v1003 = vld [vmem:[%s989 + $0x30] sm:$0xff]
            %1004 = vst [vmem:[%s990 + $0x30] sm:$0xff] %v1003
            %v1005 = vld [vmem:[%s989 + $0x38] sm:$0xff]
            %1006 = vst [vmem:[%s990 + $0x38] sm:$0xff] %v1005
            %v1007 = vld [vmem:[%s989 + $0x40] sm:$0xff]
            %1008 = vst [vmem:[%s990 + $0x40] sm:$0xff] %v1007
            %v1009 = vld [vmem:[%s989 + $0x48] sm:$0xff]
            %1010 = vst [vmem:[%s990 + $0x48] sm:$0xff] %v1009
            %v1011 = vld [vmem:[%s989 + $0x50] sm:$0xff]
            %1012 = vst [vmem:[%s990 + $0x50] sm:$0xff] %v1011
            %v1013 = vld [vmem:[%s989 + $0x58] sm:$0xff]
            %1014 = vst [vmem:[%s990 + $0x58] sm:$0xff] %v1013
            %v1015 = vld [vmem:[%s989 + $0x60] sm:$0xff]
            %1016 = vst [vmem:[%s990 + $0x60] sm:$0xff] %v1015
            %v1017 = vld [vmem:[%s989 + $0x68] sm:$0xff]
            %1018 = vst [vmem:[%s990 + $0x68] sm:$0xff] %v1017
            %v1019 = vld [vmem:[%s989 + $0x70] sm:$0xff]
            %1020 = vst [vmem:[%s990 + $0x70] sm:$0xff] %v1019
            %v1021 = vld [vmem:[%s989 + $0x78] sm:$0xff]
            %1022 = vst [vmem:[%s990 + $0x78] sm:$0xff] %v1021
            %v1023 = vld [vmem:[%s989 + $0x80] sm:$0xff]
            %1024 = vst [vmem:[%s990 + $0x80] sm:$0xff] %v1023
            %v1025 = vld [vmem:[%s989 + $0x88] sm:$0xff]
            %1026 = vst [vmem:[%s990 + $0x88] sm:$0xff] %v1025
            %v1027 = vld [vmem:[%s989 + $0x90] sm:$0xff]
            %1028 = vst [vmem:[%s990 + $0x90] sm:$0xff] %v1027
            %v1029 = vld [vmem:[%s989 + $0x98] sm:$0xff]
            %1030 = vst [vmem:[%s990 + $0x98] sm:$0xff] %v1029
            %v1031 = vld [vmem:[%s989 + $0xa0] sm:$0xff]
            %1032 = vst [vmem:[%s990 + $0xa0] sm:$0xff] %v1031
            %v1033 = vld [vmem:[%s989 + $0xa8] sm:$0xff]
            %1034 = vst [vmem:[%s990 + $0xa8] sm:$0xff] %v1033
            %v1035 = vld [vmem:[%s989 + $0xb0] sm:$0xff]
            %1036 = vst [vmem:[%s990 + $0xb0] sm:$0xff] %v1035
            %v1037 = vld [vmem:[%s989 + $0xb8] sm:$0xff]
            %1038 = vst [vmem:[%s990 + $0xb8] sm:$0xff] %v1037
          $region82: #{adapool_forward.2} parent=76 // loop_footer
            %s988 = sadd.s32 1, %s984
          $region83: #{adapool_forward.2} parent=76 // loop_footer_branch
            %983 = sbr.rel target = $region79
          $region84: #{adapool_forward.2} parent=76 // loop_exit
            _
        $region77: #{adapool_forward.2} parent=68 // pred_fallthru
          _
      $region69: #{adapool_forward.2} parent=64 // pred_fallthru
        _
      %1099 = vnop
    $region65: #{adapool_forward.2} parent=1 // pred_fallthru
      _
    // Predicated region
    $region100: #{adapool_forward.2} parent=1 // pred_check
      _
    $region101: #{adapool_forward.2} parent=1 // pred_check_branch
      %1101 = sbr.rel (0) target = $region103
    $region102: #{adapool_forward.2} parent=1 // pred_region
      _
    $region103: #{adapool_forward.2} parent=1 // pred_fallthru
      _
    // Predicated region
    $region104: #{adapool_forward.2} parent=1 // pred_check
      _
    $region105: #{adapool_forward.2} parent=1 // pred_check_branch
      %1103 = sbr.rel (0) target = $region107
    $region106: #{adapool_forward.2} parent=1 // pred_region
      _
    $region107: #{adapool_forward.2} parent=1 // pred_fallthru
      _
    // Predicated region
    $region108: #{adapool_forward.2} parent=1 // pred_check
      _
    $region109: #{adapool_forward.2} parent=1 // pred_check_branch
      %1105 = sbr.rel (0) target = $region111
    $region110: #{adapool_forward.2} parent=1 // pred_region
      _
    $region111: #{adapool_forward.2} parent=1 // pred_fallthru
      _

</llo_original>
